<compile_context>
chip_gen: v6e
topology: v6e:2x2x1
jax: 0.10.0
libtpu: 0.0.40
codegen_flags: <defaults>
</compile_context>

<pallas_src>
import functools

import jax
import jax.numpy as jnp
from jax import lax
from jax.experimental import pallas as pl
from jax.experimental.pallas import tpu as pltpu


def _silu(x):
    return x * jax.nn.sigmoid(x)


def _two_f_dis_kernel(z0_ref, z1p_ref, z1d_ref, ef_ref,
                      wef_ref, wm1_ref, bm1_ref, wm2_ref, bm2_ref,
                      out_ref, *, ti):
    N = z0_ref.shape[0]
    E = ef_ref.shape[-1]
    K = wef_ref.shape[1]
    i0 = pl.multiple_of(pl.program_id(1) * ti, ti)

    # --- ef_lin: Dense(E -> K), bias=False, no activation (bf16 MXU, f32 acc) ---
    ef0 = jnp.dot(ef_ref[...].reshape(ti * N, E), wef_ref[...],
                  preferred_element_type=jnp.float32).reshape(ti, N, K)

    # --- diagonal mask for this row tile (cheap (ti, N, 1) compare) ---
    gi = i0 + lax.broadcasted_iota(jnp.int32, (ti, N), 0)
    jj = lax.broadcasted_iota(jnp.int32, (ti, N), 1)
    dm = (gi == jj).astype(jnp.float32)[:, :, None]   # (ti, N, 1)

    # --- fused mixing (pattern folded into hoisted z1p/z1d):
    #     emb2[i,j] = z1[i]*z0[j]*ef0[i,j]*(pat1 + diag*(pat2-pat1)) ---
    z1 = z1p_ref[...][:, None, :] + dm * z1d_ref[...][:, None, :]   # (ti, N, K)
    emb2 = z1 * z0_ref[...][None, :, :] * ef0                       # (ti, N, K) f32

    # --- mix_lin: Residual(mlp_num=2): x + SiLU(SiLU(x @ Wm1 + b1) @ Wm2 + b2) ---
    x = emb2.reshape(ti * N, K)
    h = _silu(jnp.dot(x.astype(jnp.bfloat16), wm1_ref[...],
                      preferred_element_type=jnp.float32) + bm1_ref[...])
    h = _silu(jnp.dot(h.astype(jnp.bfloat16), wm2_ref[...],
                      preferred_element_type=jnp.float32) + bm2_ref[...])
    out_ref[...] = (h + x).reshape(ti, N, K).astype(out_ref.dtype)


def _vmem_capacity_bytes():
    """Per-core VMEM capacity; conservative 64 MiB (v7x) fallback."""
    try:
        info = pltpu.get_tpu_info()
        cap = getattr(info, "vmem_capacity_bytes", None)
        if cap:
            return int(cap)
    except Exception:
        pass
    return 64 * 1024 * 1024


def _per_row_bytes(N, E, K):
    """Per-unit-of-ti live footprint (lane padding + double buffers + f32 temps)."""
    e_pad, k_pad = max(E, 128), max(K, 128)
    return N * (2 * 2 * e_pad           # ef bf16 block, double-buffered, lane-padded
                + 2 * 4 * k_pad         # f32 output block, double-buffered
                + 5 * 4 * k_pad)        # live f32 temporaries (ef0/emb2/x/h/...)


def _estimate_vmem_bytes(N, E, K, ti):
    k_pad = max(K, 128)
    fixed = (2 * N * k_pad * 4                      # z0 (f32, double-buffered)
             + 2 * 2 * max(ti, 8) * k_pad * 4       # z1p, z1d row tiles
             + (E * K + 2 * K * K) * 2 + 4 * K * 4)  # weights + biases
    return fixed + ti * _per_row_bytes(N, E, K)


def _pick_row_tile(N, E, K, B, budget_bytes):
    """Largest divisor of N whose footprint fits; prefer even total parallel grid."""
    cap = max(1, budget_bytes // _per_row_bytes(N, E, K))
    fitting = [d for d in range(1, N + 1) if N % d == 0 and d <= cap]
    if not fitting:
        return 1
    even = [d for d in fitting if (B * (N // d)) % 2 == 0]  # v7x: keep both TCs busy
    return max(even) if even else max(fitting)


def two_f_dis_init(emb1, ef, params, *, ti=None, out_dtype=jnp.float32):
    """emb1: (B, N, Z) f32, ef: (B, N, N, E) f32 -> (B, N, N, K)."""
    B, N, Z = emb1.shape
    E = ef.shape[-1]
    K = params["wz0"].shape[-1]

    bf16, f32 = jnp.bfloat16, jnp.float32

    # --- hoisted z-projections (tiny XLA prologue, runs once per call) ---
    emb1_b = emb1.astype(bf16)
    z0 = _silu(jnp.dot(emb1_b, params["wz0"].astype(bf16),
                       preferred_element_type=f32) + params["bz0"])        # (B, N, K)
    z1 = _silu(jnp.dot(emb1_b, params["wz1"].astype(bf16),
                       preferred_element_type=f32) + params["bz1"])        # (B, N, K)
    z1p = z1 * params["pat"][1:2]                                          # z1 * pat[1]
    z1d = z1 * (params["pat"][2:3] - params["pat"][1:2])                   # z1 * (pat[2]-pat[1])

    wef = params["wef"].astype(bf16)
    wm1 = params["wm1"].astype(bf16)
    wm2 = params["wm2"].astype(bf16)
    bm1 = params["bm1"]
    bm2 = params["bm2"]
    ef_b = ef.astype(bf16)

    # --- generation-aware VMEM sizing ---
    cap = _vmem_capacity_bytes()
    if ti is None:
        ti = _pick_row_tile(N, E, K, B, budget_bytes=int(cap * 0.38))
    assert N % ti == 0
    vmem_limit = int(min(cap * 0.70,
                         max(_estimate_vmem_bytes(N, E, K, ti) + (8 << 20), 32 << 20)))

    def w_spec(shape):
        nd = len(shape)
        return pl.BlockSpec(shape, lambda b, t, _nd=nd: (0,) * _nd)

    grid = (B, N // ti)
    in_specs = [
        pl.BlockSpec((None, N, K), lambda b, t: (b, 0, 0)),         # z0 (all columns)
        pl.BlockSpec((None, ti, K), lambda b, t: (b, t, 0)),        # z1*pat1 row tile
        pl.BlockSpec((None, ti, K), lambda b, t: (b, t, 0)),        # z1*(pat2-pat1) row tile
        pl.BlockSpec((None, ti, N, E), lambda b, t: (b, t, 0, 0)),  # ef row tile
        w_spec((E, K)),                                             # wef
        w_spec((K, K)), w_spec((1, K)),                             # wm1, bm1
        w_spec((K, K)), w_spec((1, K)),                             # wm2, bm2
    ]
    out_specs = pl.BlockSpec((None, ti, N, K), lambda b, t: (b, t, 0, 0))

    fn = pl.pallas_call(
        functools.partial(_two_f_dis_kernel, ti=ti),
        out_shape=jax.ShapeDtypeStruct((B, N, N, K), out_dtype),
        grid=grid,
        in_specs=in_specs,
        out_specs=out_specs,
        compiler_params=pltpu.CompilerParams(
            dimension_semantics=("parallel", "parallel"),
            vmem_limit_bytes=vmem_limit),
    )
    return fn(z0, z1p, z1d, ef_b, wef, wm1, bm1, wm2, bm2)


def two_f_dis_init_ref(emb1, ef, params):
    """Pure-JAX reference using the same bf16-matmul / f32-accumulate recipe."""
    bf16, f32 = jnp.bfloat16, jnp.float32
    z0 = _silu(jnp.dot(emb1.astype(bf16), params["wz0"].astype(bf16),
                       preferred_element_type=f32) + params["bz0"])
    z1 = _silu(jnp.dot(emb1.astype(bf16), params["wz1"].astype(bf16),
                       preferred_element_type=f32) + params["bz1"])
    ef0 = jnp.einsum("bije,ek->bijk", ef.astype(bf16), params["wef"].astype(bf16),
                     preferred_element_type=f32)
    z_mixed = z0[:, None, :, :] * z1[:, :, None, :]
    B, N = emb1.shape[0], emb1.shape[1]
    idx = jnp.arange(N)
    pattern = jnp.ones((B, N, N), dtype=jnp.int32).at[:, idx, idx].set(2)
    pat_emb = params["pat"][pattern]
    emb2 = z_mixed * ef0 * pat_emb
    x = emb2
    h = _silu(jnp.dot(x.astype(bf16), params["wm1"].astype(bf16),
                      preferred_element_type=f32) + params["bm1"])
    h = _silu(jnp.dot(h.astype(bf16), params["wm2"].astype(bf16),
                      preferred_element_type=f32) + params["bm2"])
    return h + x


def init_params(key, z_hidden_dim, ef_dim, k_tuple_dim):
    ks = jax.random.split(key, 8)
    s = lambda fan_in: 1.0 / jnp.sqrt(fan_in)
    pat = jax.random.normal(ks[6], (3, k_tuple_dim), jnp.float32)
    pat = pat.at[0].set(0.0)  # padding_idx=0 -> zero row (unused by forward)
    return {
        "wz0": jax.random.normal(ks[0], (z_hidden_dim, k_tuple_dim), jnp.float32) * s(z_hidden_dim),
        "bz0": jax.random.normal(ks[1], (1, k_tuple_dim), jnp.float32) * 0.01,
        "wz1": jax.random.normal(ks[2], (z_hidden_dim, k_tuple_dim), jnp.float32) * s(z_hidden_dim),
        "bz1": jax.random.normal(ks[3], (1, k_tuple_dim), jnp.float32) * 0.01,
        "wef": jax.random.normal(ks[4], (ef_dim, k_tuple_dim), jnp.float32) * s(ef_dim),
        "pat": pat,
        "wm1": jax.random.normal(ks[5], (k_tuple_dim, k_tuple_dim), jnp.float32) * s(k_tuple_dim),
        "bm1": jnp.zeros((1, k_tuple_dim), jnp.float32),
        "wm2": jax.random.normal(ks[7], (k_tuple_dim, k_tuple_dim), jnp.float32) * s(k_tuple_dim),
        "bm2": jnp.zeros((1, k_tuple_dim), jnp.float32),
    }


if __name__ == "__main__":
    B, N = 2, 8
    Z_HIDDEN, EF_DIM, K_TUPLE = 32, 16, 128

    key = jax.random.PRNGKey(0)
    k1, k2, k3 = jax.random.split(key, 3)
    emb1 = jax.random.normal(k1, (B, N, Z_HIDDEN), jnp.float32)
    ef = jax.random.normal(k2, (B, N, N, EF_DIM), jnp.float32)
    params = init_params(k3, Z_HIDDEN, EF_DIM, K_TUPLE)

    out = jax.block_until_ready(two_f_dis_init(emb1, ef, params))
    ref = two_f_dis_init_ref(emb1, ef, params)

    assert out.shape == (B, N, N, K_TUPLE)
    max_err = float(jnp.max(jnp.abs(out - ref)))
    assert jnp.allclose(out, ref, atol=5e-3, rtol=5e-3), f"mismatch vs reference, max_err={max_err}"

    print("KERNEL_OK")
</pallas_src>

<mosaic_0001>
module attributes {stable_mosaic.version = 11 : i64} {
  func.func @_two_f_dis_kernel(%arg0: i32, %arg1: i32, %arg2: memref<1x8x128xf32, #tpu.memory_space<vmem>>, %arg3: memref<1x8x128xf32, #tpu.memory_space<vmem>>, %arg4: memref<1x8x128xf32, #tpu.memory_space<vmem>>, %arg5: memref<1x8x8x16xbf16, #tpu.memory_space<vmem>>, %arg6: memref<16x128xbf16, #tpu.memory_space<vmem>>, %arg7: memref<128x128xbf16, #tpu.memory_space<vmem>>, %arg8: memref<1x128xf32, #tpu.memory_space<vmem>>, %arg9: memref<128x128xbf16, #tpu.memory_space<vmem>>, %arg10: memref<1x128xf32, #tpu.memory_space<vmem>>, %arg11: memref<1x8x8x128xf32, #tpu.memory_space<vmem>>) attributes {dimension_semantics = [#tpu.dimension_semantics<parallel>, #tpu.dimension_semantics<parallel>], iteration_bounds = array<i64: 2, 1>, scalar_prefetch = 0 : i64, scratch_operands = 0 : i64, tpu.core_type = #tpu.core_type<tc>, window_params = [{transform_indices = @transform_0, window_bounds = array<i64: 1, 8, 128>}, {transform_indices = @transform_1, window_bounds = array<i64: 1, 8, 128>}, {transform_indices = @transform_2, window_bounds = array<i64: 1, 8, 128>}, {transform_indices = @transform_3, window_bounds = array<i64: 1, 8, 8, 16>}, {pipeline_mode = #tpu.pipeline_mode<synchronous>, transform_indices = @transform_4, window_bounds = array<i64: 16, 128>}, {pipeline_mode = #tpu.pipeline_mode<synchronous>, transform_indices = @transform_5, window_bounds = array<i64: 128, 128>}, {pipeline_mode = #tpu.pipeline_mode<synchronous>, transform_indices = @transform_6, window_bounds = array<i64: 1, 128>}, {pipeline_mode = #tpu.pipeline_mode<synchronous>, transform_indices = @transform_7, window_bounds = array<i64: 128, 128>}, {pipeline_mode = #tpu.pipeline_mode<synchronous>, transform_indices = @transform_8, window_bounds = array<i64: 1, 128>}, {transform_indices = @transform_9, window_bounds = array<i64: 1, 8, 8, 128>}]} {
    %c8_i32 = arith.constant 8 : i32
    %0 = arith.muli %arg1, %c8_i32 : i32
    %1 = tpu.assume_multiple %0, 8 : i32
    %c0 = arith.constant 0 : index
    %c0_0 = arith.constant 0 : index
    %c0_1 = arith.constant 0 : index
    %c0_2 = arith.constant 0 : index
    %2 = vector.load %arg5[%c0, %c0_0, %c0_1, %c0_2] : memref<1x8x8x16xbf16, #tpu.memory_space<vmem>>, vector<1x8x8x16xbf16>
    %3 = vector.shape_cast %2 : vector<1x8x8x16xbf16> to vector<8x8x16xbf16>
    %4 = vector.shape_cast %3 : vector<8x8x16xbf16> to vector<64x16xbf16>
    %c0_3 = arith.constant 0 : index
    %c0_4 = arith.constant 0 : index
    %5 = vector.load %arg6[%c0_3, %c0_4] : memref<16x128xbf16, #tpu.memory_space<vmem>>, vector<16x128xbf16>
    %cst = arith.constant dense<0.000000e+00> : vector<64x128xf32>
    %6 = tpu.matmul %4, %5, %cst {dimension_numbers = #tpu.dot_dimension_numbers<[1], [0], [0], [1], [0, 0, 1, 1], [], []>} : vector<64x16xbf16>, vector<16x128xbf16>, vector<64x128xf32> -> vector<64x128xf32>
    %7 = vector.shape_cast %6 : vector<64x128xf32> to vector<8x8x128xf32>
    %8 = tpu.iota {dimensions = array<i32: 0>} : vector<8x8xi32>
    %9 = vector.broadcast %1 : i32 to vector<8x8xi32>
    %10 = arith.addi %9, %8 : vector<8x8xi32>
    %11 = tpu.iota {dimensions = array<i32: 1>} : vector<8x8xi32>
    %12 = arith.cmpi eq, %10, %11 : vector<8x8xi32>
    %13 = arith.extui %12 : vector<8x8xi1> to vector<8x8xi32>
    %14 = arith.sitofp %13 : vector<8x8xi32> to vector<8x8xf32>
    %15 = vector.shape_cast %14 : vector<8x8xf32> to vector<8x8x1xf32>
    %c0_5 = arith.constant 0 : index
    %c0_6 = arith.constant 0 : index
    %c0_7 = arith.constant 0 : index
    %16 = vector.load %arg3[%c0_5, %c0_6, %c0_7] : memref<1x8x128xf32, #tpu.memory_space<vmem>>, vector<1x8x128xf32>
    %17 = vector.shape_cast %16 : vector<1x8x128xf32> to vector<8x128xf32>
    %18 = vector.shape_cast %17 : vector<8x128xf32> to vector<8x1x128xf32>
    %c0_8 = arith.constant 0 : index
    %c0_9 = arith.constant 0 : index
    %c0_10 = arith.constant 0 : index
    %19 = vector.load %arg4[%c0_8, %c0_9, %c0_10] : memref<1x8x128xf32, #tpu.memory_space<vmem>>, vector<1x8x128xf32>
    %20 = vector.shape_cast %19 : vector<1x8x128xf32> to vector<8x128xf32>
    %21 = vector.shape_cast %20 : vector<8x128xf32> to vector<8x1x128xf32>
    %22 = vector.broadcast %15 : vector<8x8x1xf32> to vector<8x8x128xf32>
    %23 = vector.broadcast %21 : vector<8x1x128xf32> to vector<8x8x128xf32>
    %24 = arith.mulf %22, %23 : vector<8x8x128xf32>
    %25 = vector.broadcast %18 : vector<8x1x128xf32> to vector<8x8x128xf32>
    %26 = arith.addf %25, %24 : vector<8x8x128xf32>
    %c0_11 = arith.constant 0 : index
    %c0_12 = arith.constant 0 : index
    %c0_13 = arith.constant 0 : index
    %27 = vector.load %arg2[%c0_11, %c0_12, %c0_13] : memref<1x8x128xf32, #tpu.memory_space<vmem>>, vector<1x8x128xf32>
    %28 = vector.shape_cast %27 : vector<1x8x128xf32> to vector<8x128xf32>
    %29 = vector.shape_cast %28 : vector<8x128xf32> to vector<1x8x128xf32>
    %30 = vector.broadcast %29 : vector<1x8x128xf32> to vector<8x8x128xf32>
    %31 = arith.mulf %26, %30 : vector<8x8x128xf32>
    %32 = arith.mulf %31, %7 : vector<8x8x128xf32>
    %33 = vector.shape_cast %32 : vector<8x8x128xf32> to vector<64x128xf32>
    %34 = arith.truncf %33 : vector<64x128xf32> to vector<64x128xbf16>
    %c0_14 = arith.constant 0 : index
    %c0_15 = arith.constant 0 : index
    %35 = vector.load %arg7[%c0_14, %c0_15] : memref<128x128xbf16, #tpu.memory_space<vmem>>, vector<128x128xbf16>
    %cst_16 = arith.constant dense<0.000000e+00> : vector<64x128xf32>
    %36 = tpu.matmul %34, %35, %cst_16 {dimension_numbers = #tpu.dot_dimension_numbers<[1], [0], [0], [1], [0, 0, 1, 1], [], []>} : vector<64x128xbf16>, vector<128x128xbf16>, vector<64x128xf32> -> vector<64x128xf32>
    %c0_17 = arith.constant 0 : index
    %c0_18 = arith.constant 0 : index
    %37 = vector.load %arg8[%c0_17, %c0_18] : memref<1x128xf32, #tpu.memory_space<vmem>>, vector<1x128xf32>
    %38 = vector.broadcast %37 : vector<1x128xf32> to vector<64x128xf32>
    %39 = arith.addf %36, %38 : vector<64x128xf32>
    %40 = arith.negf %39 : vector<64x128xf32>
    %41 = math.exp %40 : vector<64x128xf32>
    %cst_19 = arith.constant 1.000000e+00 : f32
    %42 = vector.broadcast %cst_19 : f32 to vector<64x128xf32>
    %43 = arith.addf %42, %41 : vector<64x128xf32>
    %44 = arith.divf %42, %43 : vector<64x128xf32>
    %45 = arith.mulf %39, %44 : vector<64x128xf32>
    %46 = arith.truncf %45 : vector<64x128xf32> to vector<64x128xbf16>
    %c0_20 = arith.constant 0 : index
    %c0_21 = arith.constant 0 : index
    %47 = vector.load %arg9[%c0_20, %c0_21] : memref<128x128xbf16, #tpu.memory_space<vmem>>, vector<128x128xbf16>
    %cst_22 = arith.constant dense<0.000000e+00> : vector<64x128xf32>
    %48 = tpu.matmul %46, %47, %cst_22 {dimension_numbers = #tpu.dot_dimension_numbers<[1], [0], [0], [1], [0, 0, 1, 1], [], []>} : vector<64x128xbf16>, vector<128x128xbf16>, vector<64x128xf32> -> vector<64x128xf32>
    %c0_23 = arith.constant 0 : index
    %c0_24 = arith.constant 0 : index
    %49 = vector.load %arg10[%c0_23, %c0_24] : memref<1x128xf32, #tpu.memory_space<vmem>>, vector<1x128xf32>
    %50 = vector.broadcast %49 : vector<1x128xf32> to vector<64x128xf32>
    %51 = arith.addf %48, %50 : vector<64x128xf32>
    %52 = arith.negf %51 : vector<64x128xf32>
    %53 = math.exp %52 : vector<64x128xf32>
    %cst_25 = arith.constant 1.000000e+00 : f32
    %54 = vector.broadcast %cst_25 : f32 to vector<64x128xf32>
    %55 = arith.addf %54, %53 : vector<64x128xf32>
    %56 = arith.divf %54, %55 : vector<64x128xf32>
    %57 = arith.mulf %51, %56 : vector<64x128xf32>
    %58 = arith.addf %57, %33 : vector<64x128xf32>
    %59 = vector.shape_cast %58 : vector<64x128xf32> to vector<8x8x128xf32>
    %c0_26 = arith.constant 0 : index
    %c0_27 = arith.constant 0 : index
    %c0_28 = arith.constant 0 : index
    %c0_29 = arith.constant 0 : index
    %60 = vector.load %arg11[%c0_26, %c0_27, %c0_28, %c0_29] : memref<1x8x8x128xf32, #tpu.memory_space<vmem>>, vector<1x8x8x128xf32>
    %61 = vector.shape_cast %60 : vector<1x8x8x128xf32> to vector<8x8x128xf32>
    %62 = vector.shape_cast %59 : vector<8x8x128xf32> to vector<1x8x8x128xf32>
    tpu.vector_store %arg11[%c0_26, %c0_27, %c0_28, %c0_29], %62 {strides = array<i32>} : memref<1x8x8x128xf32, #tpu.memory_space<vmem>>, vector<1x8x8x128xf32>,
    return
  }
  func.func @transform_0(%arg0: i32, %arg1: i32) -> (i32, i32, i32) {
    %c0_i32 = arith.constant 0 : i32
    %c0_i32_0 = arith.constant 0 : i32
    %c0_i32_1 = arith.constant 0 : i32
    return %arg0, %c0_i32, %c0_i32_0 : i32, i32, i32
  }
  func.func @transform_1(%arg0: i32, %arg1: i32) -> (i32, i32, i32) {
    %c0_i32 = arith.constant 0 : i32
    %c0_i32_0 = arith.constant 0 : i32
    return %arg0, %arg1, %c0_i32 : i32, i32, i32
  }
  func.func @transform_2(%arg0: i32, %arg1: i32) -> (i32, i32, i32) {
    %c0_i32 = arith.constant 0 : i32
    %c0_i32_0 = arith.constant 0 : i32
    return %arg0, %arg1, %c0_i32 : i32, i32, i32
  }
  func.func @transform_3(%arg0: i32, %arg1: i32) -> (i32, i32, i32, i32) {
    %c0_i32 = arith.constant 0 : i32
    %c0_i32_0 = arith.constant 0 : i32
    %c0_i32_1 = arith.constant 0 : i32
    return %arg0, %arg1, %c0_i32, %c0_i32_0 : i32, i32, i32, i32
  }
  func.func @transform_4(%arg0: i32, %arg1: i32) -> (i32, i32) {
    %c0_i32 = arith.constant 0 : i32
    %c0_i32_0 = arith.constant 0 : i32
    %c0_i32_1 = arith.constant 0 : i32
    return %c0_i32, %c0_i32_0 : i32, i32
  }
  func.func @transform_5(%arg0: i32, %arg1: i32) -> (i32, i32) {
    %c0_i32 = arith.constant 0 : i32
    %c0_i32_0 = arith.constant 0 : i32
    %c0_i32_1 = arith.constant 0 : i32
    return %c0_i32, %c0_i32_0 : i32, i32
  }
  func.func @transform_6(%arg0: i32, %arg1: i32) -> (i32, i32) {
    %c0_i32 = arith.constant 0 : i32
    %c0_i32_0 = arith.constant 0 : i32
    %c0_i32_1 = arith.constant 0 : i32
    return %c0_i32, %c0_i32_0 : i32, i32
  }
  func.func @transform_7(%arg0: i32, %arg1: i32) -> (i32, i32) {
    %c0_i32 = arith.constant 0 : i32
    %c0_i32_0 = arith.constant 0 : i32
    %c0_i32_1 = arith.constant 0 : i32
    return %c0_i32, %c0_i32_0 : i32, i32
  }
  func.func @transform_8(%arg0: i32, %arg1: i32) -> (i32, i32) {
    %c0_i32 = arith.constant 0 : i32
    %c0_i32_0 = arith.constant 0 : i32
    %c0_i32_1 = arith.constant 0 : i32
    return %c0_i32, %c0_i32_0 : i32, i32
  }
  func.func @transform_9(%arg0: i32, %arg1: i32) -> (i32, i32, i32, i32) {
    %c0_i32 = arith.constant 0 : i32
    %c0_i32_0 = arith.constant 0 : i32
    %c0_i32_1 = arith.constant 0 : i32
    return %arg0, %arg1, %c0_i32, %c0_i32_0 : i32, i32, i32, i32
  }
}

</mosaic_0001>

<llo_original>
// kernel: tpu_custom_call.1
$region0: #{tpu_custom_call.1}
  #allocation0 [shape = 'u32[]', space=smem, size = 0x4, offset = 0x4, fixed_abs, tag = 'smem constant byte address 0x4 - core index']
  #allocation1 [shape = 'u32[144,128]{1,0:T(1,128)}', space=vmem, size = 0x12000, scoped, tag = 'internal scratch']
  %s0 = inlined_call_operand.hbm [shape: f32[2,8,128], index: 0, kind: input, shape index: {}]
  %s1 = inlined_call_operand.hbm [shape: f32[2,8,128], index: 1, kind: input, shape index: {}]
  %s2 = inlined_call_operand.hbm [shape: f32[2,8,128], index: 2, kind: input, shape index: {}]
  %s3 = inlined_call_operand.hbm [shape: bf16[2,8,8,16], index: 3, kind: input, shape index: {}]
  %s4 = inlined_call_operand.hbm [shape: bf16[16,128], index: 4, kind: input, shape index: {}]
  %s5 = inlined_call_operand.hbm [shape: bf16[128,128], index: 5, kind: input, shape index: {}]
  %s6 = inlined_call_operand.vmem [shape: f32[1,128], index: 6, kind: input, shape index: {}]
  %s7 = inlined_call_operand.hbm [shape: bf16[128,128], index: 7, kind: input, shape index: {}]
  %s8 = inlined_call_operand.vmem [shape: f32[1,128], index: 8, kind: input, shape index: {}]
  %s9 = inlined_call_operand.hbm [shape: f32[2,8,8,128], index: 9, kind: output, shape index: {}]
  %s10 = sld [smem:[#allocation0]]
  $region97: #{tpu_custom_call.1} parent=0
    _
  %s12 = ssub.s32 1, %s10
  %s13 = scalar_select 0, %s12, %s10
  $region1: #{tpu_custom_call.1} parent=0
    #allocation2 [shape = 'u8[8192]{0}', space=vmem, size = 0x2000, scoped, tag = 'input window, operand 0']
    #allocation3 [shape = 's32[2]{0}', space=sflag, size = 0x8, scoped, tag = 'scoped memory for tpu_custom_call.1']
    #allocation4 [shape = 's32[2]{0}', space=sflag, size = 0x8, scoped, tag = 'scoped memory for tpu_custom_call.1']
    #allocation5 [shape = 'u8[8192]{0}', space=vmem, size = 0x2000, scoped, tag = 'input window, operand 1']
    #allocation6 [shape = 's32[2]{0}', space=sflag, size = 0x8, scoped, tag = 'scoped memory for tpu_custom_call.1']
    #allocation7 [shape = 'u8[8192]{0}', space=vmem, size = 0x2000, scoped, tag = 'input window, operand 2']
    #allocation8 [shape = 'u8[32768]{0}', space=vmem, size = 0x8000, scoped, tag = 'input window, operand 3']
    #allocation9 [shape = 's32[2]{0}', space=sflag, size = 0x8, scoped, tag = 'scoped memory for tpu_custom_call.1']
    #allocation10 [shape = 'u8[4096]{0}', space=vmem, size = 0x1000, scoped, tag = 'input window, operand 4, single buffered']
    #allocation11 [shape = 'u8[32768]{0}', space=vmem, size = 0x8000, scoped, tag = 'input window, operand 5, single buffered']
    #allocation12 [shape = 's32[1]{0}', space=sflag, size = 0x4, scoped, tag = 'scoped memory for tpu_custom_call.1']
    #allocation13 [shape = 'u8[32768]{0}', space=vmem, size = 0x8000, scoped, tag = 'input window, operand 7, single buffered']
    #allocation14 [shape = 'u8[65536]{0}', space=vmem, size = 0x10000, scoped, tag = 'output window, operand 0']
    %14 = vsyncpa [#allocation3], 0
    %s15 = scalar_lea.sflag [#allocation3], 1
    %16 = vsyncpa %s15, 0
    %17 = vsyncpa [#allocation6], 0
    %s18 = scalar_lea.sflag [#allocation6], 1
    %19 = vsyncpa %s18, 0
    %20 = vsyncpa [#allocation9], 0
    %s21 = scalar_lea.sflag [#allocation9], 1
    %22 = vsyncpa %s21, 0
    %23 = vsyncpa [#allocation12], 0
    %24 = vsyncpa [#allocation4], 0
    %s25 = scalar_lea.sflag [#allocation4], 1
    %26 = vsyncpa %s25, 0
    loop: start=0, step=1, limit=4
    $region2: #{tpu_custom_call.1} parent=1 // loop_pre_header
      _
    $region3: #{tpu_custom_call.1} parent=1 // loop_header
      %s28 = sphi 0, %s32
      %p29 = scmp.ge.s32.totalorder %s28, 4
      %s35 = sphi 0, %s47
      %s36 = sphi 0, %s43
      %s37 = sphi 0, %s35
      %s38 = sphi 0, %s36
      %s39 = sphi 0, %s37
      %s40 = sphi 0, %s38
      %s50 = sphi 0, %s52
      %s53 = sphi 0, %s50
      %s54 = sphi 0, %s53
      %s70 = sphi 0, %s54
      %s78 = sphi 0, %s80
      %s81 = sphi 0, %s78
      %s82 = sphi 0, %s81
      %s98 = sphi 0, %s82
      %s106 = sphi 0, %s108
      %s109 = sphi 0, %s106
      %s110 = sphi 0, %s109
      %s126 = sphi 0, %s110
      %s134 = sphi 0, %s136
      %s137 = sphi 0, %s134
      %s138 = sphi 0, %s137
      %s154 = sphi 0, %s138
      %s158 = sphi 0, %s158
      %s160 = sphi 0, %s158
      %s161 = sphi 0, %s160
      %s175 = sphi 0, %s161
      %s179 = sphi 0, %s179
      %s181 = sphi 0, %s179
      %s182 = sphi 0, %s181
      %s196 = sphi 0, %s182
      %s200 = sphi 0, %s200
      %s202 = sphi 0, %s200
      %s203 = sphi 0, %s202
      %s217 = sphi 0, %s203
      %s221 = sphi 0, %s221
      %s223 = sphi 0, %s221
      %s224 = sphi 0, %s223
      %s238 = sphi 0, %s224
      %s242 = sphi 0, %s242
      %s244 = sphi 0, %s242
      %s245 = sphi 0, %s244
      %s259 = sphi 0, %s245
      %s267 = sphi 0, %s269
      %s270 = sphi 0, %s267
      %s271 = sphi 0, %s270
      %s287 = sphi 0, %s271
    $region4: #{tpu_custom_call.1} parent=1 // loop_header_branch
      %31 = sbr.rel (%p29) target = $region8
    $region5: #{tpu_custom_call.1} parent=1 // loop_body
      %s33 = ssub.s32 %s28, 1
      %s34 = ssub.s32 %s28, 2
      %s41 = sadd.s32 1, %s36
      %p42 = scmp.ge.s32.totalorder %s41, 1
      %s43 = scalar_select %p42, 0, %s41
      %s44 = sadd.s32 1, %s35
      %s45 = scalar_select %p42, %s44, %s35
      %p46 = scmp.ge.s32.totalorder %s45, 2
      %s47 = scalar_select %p46, 0, %s45
      %s48 = ssub.s32 %s35, %s47
      %p49 = scmp.eq.s32.totalorder %s48, 0
      %s51 = sadd.s32 %s50, 1
      %s52 = scalar_select %p49, %s50, %s51
      %p55 = pneg %p49
      %p56 = scmp.eq.s32.totalorder %s28, 1
      %p57 = por %p55, %p56
      %p58 = scmp.ne.s32.totalorder %s50, %s53
      %p59 = scmp.eq.s32.totalorder %s28, 0
      %p60 = por %p58, %p59
      %p61 = scmp.ne.s32.totalorder %s50, %s53
      %p62 = scmp.eq.s32.totalorder %s33, 1
      %p63 = por %p61, %p62
      %p64 = scmp.ne.s32.totalorder %s53, %s54
      %p65 = scmp.eq.s32.totalorder %s33, 0
      %p66 = por %p64, %p65
      %p67 = scmp.ne.s32.totalorder %s53, %s54
      %p68 = scmp.eq.s32.totalorder %s34, 1
      %p69 = por %p67, %p68
      %p71 = scmp.ne.s32.totalorder %s54, %s70
      %p72 = scmp.eq.s32.totalorder %s34, 0
      %p73 = por %p71, %p72
      %s74 = ssub.s32 %s35, %s47
      %s75 = ssub.s32 %s36, %s43
      %s76 = sor.u32 %s74, %s75
      %p77 = scmp.eq.s32.totalorder %s76, 0
      %s79 = sadd.s32 %s78, 1
      %s80 = scalar_select %p77, %s78, %s79
      %p83 = pneg %p77
      %p84 = scmp.eq.s32.totalorder %s28, 1
      %p85 = por %p83, %p84
      %p86 = scmp.ne.s32.totalorder %s78, %s81
      %p87 = scmp.eq.s32.totalorder %s28, 0
      %p88 = por %p86, %p87
      %p89 = scmp.ne.s32.totalorder %s78, %s81
      %p90 = scmp.eq.s32.totalorder %s33, 1
      %p91 = por %p89, %p90
      %p92 = scmp.ne.s32.totalorder %s81, %s82
      %p93 = scmp.eq.s32.totalorder %s33, 0
      %p94 = por %p92, %p93
      %p95 = scmp.ne.s32.totalorder %s81, %s82
      %p96 = scmp.eq.s32.totalorder %s34, 1
      %p97 = por %p95, %p96
      %p99 = scmp.ne.s32.totalorder %s82, %s98
      %p100 = scmp.eq.s32.totalorder %s34, 0
      %p101 = por %p99, %p100
      %s102 = ssub.s32 %s35, %s47
      %s103 = ssub.s32 %s36, %s43
      %s104 = sor.u32 %s102, %s103
      %p105 = scmp.eq.s32.totalorder %s104, 0
      %s107 = sadd.s32 %s106, 1
      %s108 = scalar_select %p105, %s106, %s107
      %p111 = pneg %p105
      %p112 = scmp.eq.s32.totalorder %s28, 1
      %p113 = por %p111, %p112
      %p114 = scmp.ne.s32.totalorder %s106, %s109
      %p115 = scmp.eq.s32.totalorder %s28, 0
      %p116 = por %p114, %p115
      %p117 = scmp.ne.s32.totalorder %s106, %s109
      %p118 = scmp.eq.s32.totalorder %s33, 1
      %p119 = por %p117, %p118
      %p120 = scmp.ne.s32.totalorder %s109, %s110
      %p121 = scmp.eq.s32.totalorder %s33, 0
      %p122 = por %p120, %p121
      %p123 = scmp.ne.s32.totalorder %s109, %s110
      %p124 = scmp.eq.s32.totalorder %s34, 1
      %p125 = por %p123, %p124
      %p127 = scmp.ne.s32.totalorder %s110, %s126
      %p128 = scmp.eq.s32.totalorder %s34, 0
      %p129 = por %p127, %p128
      %s130 = ssub.s32 %s35, %s47
      %s131 = ssub.s32 %s36, %s43
      %s132 = sor.u32 %s130, %s131
      %p133 = scmp.eq.s32.totalorder %s132, 0
      %s135 = sadd.s32 %s134, 1
      %s136 = scalar_select %p133, %s134, %s135
      %p139 = pneg %p133
      %p140 = scmp.eq.s32.totalorder %s28, 1
      %p141 = por %p139, %p140
      %p142 = scmp.ne.s32.totalorder %s134, %s137
      %p143 = scmp.eq.s32.totalorder %s28, 0
      %p144 = por %p142, %p143
      %p145 = scmp.ne.s32.totalorder %s134, %s137
      %p146 = scmp.eq.s32.totalorder %s33, 1
      %p147 = por %p145, %p146
      %p148 = scmp.ne.s32.totalorder %s137, %s138
      %p149 = scmp.eq.s32.totalorder %s33, 0
      %p150 = por %p148, %p149
      %p151 = scmp.ne.s32.totalorder %s137, %s138
      %p152 = scmp.eq.s32.totalorder %s34, 1
      %p153 = por %p151, %p152
      %p155 = scmp.ne.s32.totalorder %s138, %s154
      %p156 = scmp.eq.s32.totalorder %s34, 0
      %p157 = por %p155, %p156
      %s159 = sadd.s32 %s158, 1
      %p162 = scmp.eq.s32.totalorder %s28, 1
      %p163 = scmp.ne.s32.totalorder %s158, %s160
      %p164 = scmp.eq.s32.totalorder %s28, 0
      %p165 = por %p163, %p164
      %p166 = scmp.ne.s32.totalorder %s158, %s160
      %p167 = scmp.eq.s32.totalorder %s33, 1
      %p168 = por %p166, %p167
      %p169 = scmp.ne.s32.totalorder %s160, %s161
      %p170 = scmp.eq.s32.totalorder %s33, 0
      %p171 = por %p169, %p170
      %p172 = scmp.ne.s32.totalorder %s160, %s161
      %p173 = scmp.eq.s32.totalorder %s34, 1
      %p174 = por %p172, %p173
      %p176 = scmp.ne.s32.totalorder %s161, %s175
      %p177 = scmp.eq.s32.totalorder %s34, 0
      %p178 = por %p176, %p177
      %s180 = sadd.s32 %s179, 1
      %p183 = scmp.eq.s32.totalorder %s28, 1
      %p184 = scmp.ne.s32.totalorder %s179, %s181
      %p185 = scmp.eq.s32.totalorder %s28, 0
      %p186 = por %p184, %p185
      %p187 = scmp.ne.s32.totalorder %s179, %s181
      %p188 = scmp.eq.s32.totalorder %s33, 1
      %p189 = por %p187, %p188
      %p190 = scmp.ne.s32.totalorder %s181, %s182
      %p191 = scmp.eq.s32.totalorder %s33, 0
      %p192 = por %p190, %p191
      %p193 = scmp.ne.s32.totalorder %s181, %s182
      %p194 = scmp.eq.s32.totalorder %s34, 1
      %p195 = por %p193, %p194
      %p197 = scmp.ne.s32.totalorder %s182, %s196
      %p198 = scmp.eq.s32.totalorder %s34, 0
      %p199 = por %p197, %p198
      %s201 = sadd.s32 %s200, 1
      %p204 = scmp.eq.s32.totalorder %s28, 1
      %p205 = scmp.ne.s32.totalorder %s200, %s202
      %p206 = scmp.eq.s32.totalorder %s28, 0
      %p207 = por %p205, %p206
      %p208 = scmp.ne.s32.totalorder %s200, %s202
      %p209 = scmp.eq.s32.totalorder %s33, 1
      %p210 = por %p208, %p209
      %p211 = scmp.ne.s32.totalorder %s202, %s203
      %p212 = scmp.eq.s32.totalorder %s33, 0
      %p213 = por %p211, %p212
      %p214 = scmp.ne.s32.totalorder %s202, %s203
      %p215 = scmp.eq.s32.totalorder %s34, 1
      %p216 = por %p214, %p215
      %p218 = scmp.ne.s32.totalorder %s203, %s217
      %p219 = scmp.eq.s32.totalorder %s34, 0
      %p220 = por %p218, %p219
      %s222 = sadd.s32 %s221, 1
      %p225 = scmp.eq.s32.totalorder %s28, 1
      %p226 = scmp.ne.s32.totalorder %s221, %s223
      %p227 = scmp.eq.s32.totalorder %s28, 0
      %p228 = por %p226, %p227
      %p229 = scmp.ne.s32.totalorder %s221, %s223
      %p230 = scmp.eq.s32.totalorder %s33, 1
      %p231 = por %p229, %p230
      %p232 = scmp.ne.s32.totalorder %s223, %s224
      %p233 = scmp.eq.s32.totalorder %s33, 0
      %p234 = por %p232, %p233
      %p235 = scmp.ne.s32.totalorder %s223, %s224
      %p236 = scmp.eq.s32.totalorder %s34, 1
      %p237 = por %p235, %p236
      %p239 = scmp.ne.s32.totalorder %s224, %s238
      %p240 = scmp.eq.s32.totalorder %s34, 0
      %p241 = por %p239, %p240
      %s243 = sadd.s32 %s242, 1
      %p246 = scmp.eq.s32.totalorder %s28, 1
      %p247 = scmp.ne.s32.totalorder %s242, %s244
      %p248 = scmp.eq.s32.totalorder %s28, 0
      %p249 = por %p247, %p248
      %p250 = scmp.ne.s32.totalorder %s242, %s244
      %p251 = scmp.eq.s32.totalorder %s33, 1
      %p252 = por %p250, %p251
      %p253 = scmp.ne.s32.totalorder %s244, %s245
      %p254 = scmp.eq.s32.totalorder %s33, 0
      %p255 = por %p253, %p254
      %p256 = scmp.ne.s32.totalorder %s244, %s245
      %p257 = scmp.eq.s32.totalorder %s34, 1
      %p258 = por %p256, %p257
      %p260 = scmp.ne.s32.totalorder %s245, %s259
      %p261 = scmp.eq.s32.totalorder %s34, 0
      %p262 = por %p260, %p261
      %s263 = ssub.s32 %s35, %s47
      %s264 = ssub.s32 %s36, %s43
      %s265 = sor.u32 %s263, %s264
      %p266 = scmp.eq.s32.totalorder %s265, 0
      %s268 = sadd.s32 %s267, 1
      %s269 = scalar_select %p266, %s267, %s268
      %p272 = pneg %p266
      %p273 = scmp.eq.s32.totalorder %s28, 1
      %p274 = por %p272, %p273
      %p275 = scmp.ne.s32.totalorder %s267, %s270
      %p276 = scmp.eq.s32.totalorder %s28, 0
      %p277 = por %p275, %p276
      %p278 = scmp.ne.s32.totalorder %s267, %s270
      %p279 = scmp.eq.s32.totalorder %s33, 1
      %p280 = por %p278, %p279
      %p281 = scmp.ne.s32.totalorder %s270, %s271
      %p282 = scmp.eq.s32.totalorder %s33, 0
      %p283 = por %p281, %p282
      %p284 = scmp.ne.s32.totalorder %s270, %s271
      %p285 = scmp.eq.s32.totalorder %s34, 1
      %p286 = por %p284, %p285
      %p288 = scmp.ne.s32.totalorder %s271, %s287
      %p289 = scmp.eq.s32.totalorder %s34, 0
      %p290 = por %p288, %p289
      %p291 = scmp.le.s32.totalorder 1, %s28
      %p292 = scmp.lt.s32.totalorder %s28, 3
      %p293 = pnand %p291, %p292
      %p294 = pneg %p293
      // Predicated region
      $region9: #{tpu_custom_call.1} parent=5 // pred_check
        _
      $region10: #{tpu_custom_call.1} parent=5 // pred_check_branch
        %296 = sbr.rel (%p293) target = $region12
      $region11: #{tpu_custom_call.1} parent=5 // pred_region
        %s297 = ssub.s32 %s28, 1
        // Predicated region
        $region13: #{tpu_custom_call.1} parent=11 // pred_check
          %p298 = pneg %p171
        $region14: #{tpu_custom_call.1} parent=11 // pred_check_branch
          %300 = sbr.rel (%p298) target = $region16
        $region15: #{tpu_custom_call.1} parent=11 // pred_region
          %s302 = ssub.s32 128, 128
          %303 = vsyncadd [#allocation9], %s302
          %s304 = sshll.u32 [#allocation10], 4
          %s305 = int_to_ptr.vmem [resolvable:$true] %s304
          %310 = dma.hbm_to_vmem [thread:$0]  %s4, 128, %s305, [#allocation9], 64, 64, 4
        $region16: #{tpu_custom_call.1} parent=11 // pred_fallthru
          _
        // Predicated region
        $region17: #{tpu_custom_call.1} parent=11 // pred_check
          %p311 = pneg %p192
        $region18: #{tpu_custom_call.1} parent=11 // pred_check_branch
          %313 = sbr.rel (%p311) target = $region20
        $region19: #{tpu_custom_call.1} parent=11 // pred_region
          %s315 = ssub.s32 1024, 1024
          %316 = vsyncadd [#allocation12], %s315
          %s317 = sshll.u32 [#allocation11], 4
          %s318 = int_to_ptr.vmem [resolvable:$true] %s317
          %323 = dma.hbm_to_vmem [thread:$0]  %s5, 1024, %s318, [#allocation12], 64, 64, 4
        $region20: #{tpu_custom_call.1} parent=11 // pred_fallthru
          _
        // Predicated region
        $region21: #{tpu_custom_call.1} parent=11 // pred_check
          %p324 = pneg %p213
        $region22: #{tpu_custom_call.1} parent=11 // pred_check_branch
          %326 = sbr.rel (%p324) target = $region24
        $region23: #{tpu_custom_call.1} parent=11 // pred_region
          _
        $region24: #{tpu_custom_call.1} parent=11 // pred_fallthru
          _
        // Predicated region
        $region25: #{tpu_custom_call.1} parent=11 // pred_check
          %p327 = pneg %p234
        $region26: #{tpu_custom_call.1} parent=11 // pred_check_branch
          %329 = sbr.rel (%p327) target = $region28
        $region27: #{tpu_custom_call.1} parent=11 // pred_region
          %s331 = ssub.s32 1024, 1024
          %332 = vsyncadd [#allocation12], %s331
          %s333 = sshll.u32 [#allocation13], 4
          %s334 = int_to_ptr.vmem [resolvable:$true] %s333
          %339 = dma.hbm_to_vmem [thread:$0]  %s7, 1024, %s334, [#allocation12], 64, 64, 4
        $region28: #{tpu_custom_call.1} parent=11 // pred_fallthru
          _
        // Predicated region
        $region29: #{tpu_custom_call.1} parent=11 // pred_check
          %p340 = pneg %p255
        $region30: #{tpu_custom_call.1} parent=11 // pred_check_branch
          %342 = sbr.rel (%p340) target = $region32
        $region31: #{tpu_custom_call.1} parent=11 // pred_region
          _
        $region32: #{tpu_custom_call.1} parent=11 // pred_fallthru
          _
      $region12: #{tpu_custom_call.1} parent=5 // pred_fallthru
        _
      %p343 = scmp.lt.s32.totalorder %s28, 2
      // Predicated region
      $region33: #{tpu_custom_call.1} parent=5 // pred_check
        %p344 = pneg %p343
      $region34: #{tpu_custom_call.1} parent=5 // pred_check_branch
        %346 = sbr.rel (%p344) target = $region36
      $region35: #{tpu_custom_call.1} parent=5 // pred_region
        // Predicated region
        $region37: #{tpu_custom_call.1} parent=35 // pred_check
          %p347 = pneg %p60
        $region38: #{tpu_custom_call.1} parent=35 // pred_check_branch
          %349 = sbr.rel (%p347) target = $region40
        $region39: #{tpu_custom_call.1} parent=35 // pred_region
          %s350 = sand.u32 %s50, 1
          %s351 = scalar_lea.sflag [#allocation3], %s350
          %s352 = sand.u32 %s50, 1
          %s353 = smul.addr %s352, 8
          %s354 = scalar_lea.vmem [#allocation2], %s353
          %s356 = ssub.s32 128, 128
          %357 = vsyncadd %s351, %s356
          %s358 = smul.addr %s35, 128
          %s359 = scalar_lea.hbm %s0, %s358
          %s361 = sshll.u32 %s354, 4
          %s362 = int_to_ptr.vmem [resolvable:$true] %s361
          %364 = dma.hbm_to_vmem [thread:$0]  %s359, 128, %s362, %s351
        $region40: #{tpu_custom_call.1} parent=35 // pred_fallthru
          _
        // Predicated region
        $region41: #{tpu_custom_call.1} parent=35 // pred_check
          %p365 = pneg %p88
        $region42: #{tpu_custom_call.1} parent=35 // pred_check_branch
          %367 = sbr.rel (%p365) target = $region44
        $region43: #{tpu_custom_call.1} parent=35 // pred_region
          %s368 = sand.u32 %s28, 1
          %s369 = scalar_lea.sflag [#allocation6], %s368
          %s370 = sand.u32 %s78, 1
          %s371 = smul.addr %s370, 8
          %s372 = scalar_lea.vmem [#allocation5], %s371
          %s374 = ssub.s32 128, 128
          %375 = vsyncadd %s369, %s374
          %s376 = sadd.s32 %s36, %s35
          %s377 = smul.addr %s376, 128
          %s378 = scalar_lea.hbm %s1, %s377
          %s380 = sshll.u32 %s372, 4
          %s381 = int_to_ptr.vmem [resolvable:$true] %s380
          %383 = dma.hbm_to_vmem [thread:$0]  %s378, 128, %s381, %s369
        $region44: #{tpu_custom_call.1} parent=35 // pred_fallthru
          _
        // Predicated region
        $region45: #{tpu_custom_call.1} parent=35 // pred_check
          %p384 = pneg %p116
        $region46: #{tpu_custom_call.1} parent=35 // pred_check_branch
          %386 = sbr.rel (%p384) target = $region48
        $region47: #{tpu_custom_call.1} parent=35 // pred_region
          %s387 = sand.u32 %s28, 1
          %s388 = scalar_lea.sflag [#allocation6], %s387
          %s389 = sand.u32 %s106, 1
          %s390 = smul.addr %s389, 8
          %s391 = scalar_lea.vmem [#allocation7], %s390
          %s393 = ssub.s32 128, 128
          %394 = vsyncadd %s388, %s393
          %s395 = sadd.s32 %s36, %s35
          %s396 = smul.addr %s395, 128
          %s397 = scalar_lea.hbm %s2, %s396
          %s399 = sshll.u32 %s391, 4
          %s400 = int_to_ptr.vmem [resolvable:$true] %s399
          %402 = dma.hbm_to_vmem [thread:$0]  %s397, 128, %s400, %s388
        $region48: #{tpu_custom_call.1} parent=35 // pred_fallthru
          _
        // Predicated region
        $region49: #{tpu_custom_call.1} parent=35 // pred_check
          %p403 = pneg %p144
        $region50: #{tpu_custom_call.1} parent=35 // pred_check_branch
          %405 = sbr.rel (%p403) target = $region52
        $region51: #{tpu_custom_call.1} parent=35 // pred_region
          %s406 = sand.u32 %s28, 1
          %s407 = scalar_lea.sflag [#allocation9], %s406
          %s408 = sand.u32 %s134, 1
          %s409 = smul.addr %s408, 32
          %s410 = scalar_lea.vmem [#allocation8], %s409
          %s411 = smul.u32 8, %s36
          %s413 = ssub.s32 512, 512
          %414 = vsyncadd %s407, %s413
          %s415 = smul.addr %s35, 8
          %s416 = sadd.s32 %s411, %s415
          %s417 = smul.addr %s416, 64
          %s418 = scalar_lea.hbm %s3, %s417
          %s419 = sshll.u32 %s410, 4
          %s420 = int_to_ptr.vmem [resolvable:$true] %s419
          %425 = dma.hbm_to_vmem [thread:$0]  %s418, 512, %s420, %s407, 64, 64, 4
        $region52: #{tpu_custom_call.1} parent=35 // pred_fallthru
          _
      $region36: #{tpu_custom_call.1} parent=5 // pred_fallthru
        _
      %p426 = scmp.le.s32.totalorder 1, %s28
      %p427 = scmp.lt.s32.totalorder %s28, 3
      %p428 = pnand %p426, %p427
      %p429 = pneg %p428
      // Predicated region
      $region53: #{tpu_custom_call.1} parent=5 // pred_check
        _
      $region54: #{tpu_custom_call.1} parent=5 // pred_check_branch
        %431 = sbr.rel (%p428) target = $region56
      $region55: #{tpu_custom_call.1} parent=5 // pred_region
        %s432 = ssub.s32 %s28, 1
        %s433 = sand.u32 %s53, 1
        %s434 = scalar_lea.sflag [#allocation3], %s433
        %s435 = sand.u32 %s53, 1
        %s436 = smul.addr %s435, 8
        %s437 = scalar_lea.vmem [#allocation2], %s436
        // Predicated region
        $region57: #{tpu_custom_call.1} parent=55 // pred_check
          %p438 = pneg %p66
        $region58: #{tpu_custom_call.1} parent=55 // pred_check_branch
          %440 = sbr.rel (%p438) target = $region60
        $region59: #{tpu_custom_call.1} parent=55 // pred_region
          %441 = dma.done %s434, 128
        $region60: #{tpu_custom_call.1} parent=55 // pred_fallthru
          _
        %s442 = sand.u32 %s33, 1
        %s443 = scalar_lea.sflag [#allocation6], %s442
        %s444 = sand.u32 %s81, 1
        %s445 = smul.addr %s444, 8
        %s446 = scalar_lea.vmem [#allocation5], %s445
        // Predicated region
        $region61: #{tpu_custom_call.1} parent=55 // pred_check
          %p447 = pneg %p94
        $region62: #{tpu_custom_call.1} parent=55 // pred_check_branch
          %449 = sbr.rel (%p447) target = $region64
        $region63: #{tpu_custom_call.1} parent=55 // pred_region
          %450 = dma.done %s443, 128
        $region64: #{tpu_custom_call.1} parent=55 // pred_fallthru
          _
        %s451 = sand.u32 %s33, 1
        %s452 = scalar_lea.sflag [#allocation6], %s451
        %s453 = sand.u32 %s109, 1
        %s454 = smul.addr %s453, 8
        %s455 = scalar_lea.vmem [#allocation7], %s454
        // Predicated region
        $region65: #{tpu_custom_call.1} parent=55 // pred_check
          %p456 = pneg %p122
        $region66: #{tpu_custom_call.1} parent=55 // pred_check_branch
          %458 = sbr.rel (%p456) target = $region68
        $region67: #{tpu_custom_call.1} parent=55 // pred_region
          %459 = dma.done %s452, 128
        $region68: #{tpu_custom_call.1} parent=55 // pred_fallthru
          _
        %s460 = sand.u32 %s33, 1
        %s461 = scalar_lea.sflag [#allocation9], %s460
        %s462 = sand.u32 %s137, 1
        %s463 = smul.addr %s462, 32
        %s464 = scalar_lea.vmem [#allocation8], %s463
        // Predicated region
        $region69: #{tpu_custom_call.1} parent=55 // pred_check
          %p465 = pneg %p150
        $region70: #{tpu_custom_call.1} parent=55 // pred_check_branch
          %467 = sbr.rel (%p465) target = $region72
        $region71: #{tpu_custom_call.1} parent=55 // pred_region
          %468 = dma.done %s461, 512
        $region72: #{tpu_custom_call.1} parent=55 // pred_fallthru
          _
        // Predicated region
        $region73: #{tpu_custom_call.1} parent=55 // pred_check
          %p469 = pneg %p171
        $region74: #{tpu_custom_call.1} parent=55 // pred_check_branch
          %471 = sbr.rel (%p469) target = $region76
        $region75: #{tpu_custom_call.1} parent=55 // pred_region
          %472 = dma.done [#allocation9], 128
        $region76: #{tpu_custom_call.1} parent=55 // pred_fallthru
          _
        // Predicated region
        $region77: #{tpu_custom_call.1} parent=55 // pred_check
          %p473 = pneg %p192
        $region78: #{tpu_custom_call.1} parent=55 // pred_check_branch
          %475 = sbr.rel (%p473) target = $region80
        $region79: #{tpu_custom_call.1} parent=55 // pred_region
          %476 = dma.done [#allocation12], 1024
        $region80: #{tpu_custom_call.1} parent=55 // pred_fallthru
          _
        // Predicated region
        $region81: #{tpu_custom_call.1} parent=55 // pred_check
          %p477 = pneg %p234
        $region82: #{tpu_custom_call.1} parent=55 // pred_check_branch
          %479 = sbr.rel (%p477) target = $region84
        $region83: #{tpu_custom_call.1} parent=55 // pred_region
          %480 = dma.done [#allocation12], 1024
        $region84: #{tpu_custom_call.1} parent=55 // pred_fallthru
          _
        %s481 = sand.u32 %s53, 1
        %s482 = scalar_lea.sflag [#allocation3], %s481
        %s483 = sand.u32 %s53, 1
        %s484 = smul.addr %s483, 8
        %s485 = scalar_lea.vmem [#allocation2], %s484
        %p486 = pneg %p66
        %p487 = pneg %p63
        %s488 = sand.u32 %s33, 1
        %s489 = scalar_lea.sflag [#allocation6], %s488
        %s490 = sand.u32 %s81, 1
        %s491 = smul.addr %s490, 8
        %s492 = scalar_lea.vmem [#allocation5], %s491
        %p493 = pneg %p94
        %p494 = pneg %p91
        %s495 = sand.u32 %s33, 1
        %s496 = scalar_lea.sflag [#allocation6], %s495
        %s497 = sand.u32 %s109, 1
        %s498 = smul.addr %s497, 8
        %s499 = scalar_lea.vmem [#allocation7], %s498
        %p500 = pneg %p122
        %p501 = pneg %p119
        %s502 = sand.u32 %s33, 1
        %s503 = scalar_lea.sflag [#allocation9], %s502
        %s504 = sand.u32 %s137, 1
        %s505 = smul.addr %s504, 32
        %s506 = scalar_lea.vmem [#allocation8], %s505
        %p507 = pneg %p150
        %p508 = pneg %p147
        %p509 = pneg %p171
        %p510 = pneg %p168
        %p511 = pneg %p192
        %p512 = pneg %p189
        %p513 = pneg %p213
        %p514 = pneg %p210
        %p515 = pneg %p234
        %p516 = pneg %p231
        %p517 = pneg %p255
        %p518 = pneg %p252
        %p519 = pneg %p283
        %p520 = pneg %p280
        %s521 = sand.u32 %s270, 1
        %s522 = scalar_lea.sflag [#allocation4], %s521
        %s523 = sand.u32 %s270, 1
        %s524 = smul.addr %s523, 64
        %s525 = scalar_lea.vmem [#allocation14], %s524
        %s526 = smul.u32 8, %s38
        %s527 = smul.u32 8, %s38
        %s529 = smul.u32 %s38, 8
        %v530 = vld [vmem:[%s464] sm:$0xf]
        %v531 = vld [vmem:[%s464 + $0x4] sm:$0xf]
        %v532 = vld [vmem:[%s464 + $0x8] sm:$0xf]
        %v533 = vld [vmem:[%s464 + $0xc] sm:$0xf]
        %v534 = vld [vmem:[%s464 + $0x10] sm:$0xf]
        %v535 = vld [vmem:[%s464 + $0x14] sm:$0xf]
        %v536 = vld [vmem:[%s464 + $0x18] sm:$0xf]
        %v537 = vld [vmem:[%s464 + $0x1c] sm:$0xf]
        %v538 = vld [vmem:[#allocation10] sm:$0xf]
        %v539 = vld [vmem:[#allocation10 + $0x4] sm:$0xf]
        %v548 = vunpack.c.l.b16 %v530
        %v549 = vunpack.c.l.b16 %v531
        %v550 = vunpack.c.l.b16 %v532
        %v551 = vunpack.c.l.b16 %v533
        %v552 = vunpack.c.l.b16 %v534
        %v553 = vunpack.c.l.b16 %v535
        %v554 = vunpack.c.l.b16 %v536
        %v555 = vunpack.c.l.b16 %v537
        %v556 = vpack.c.b16 %v549, %v548
        %v557 = vpack.c.b16 %v551, %v550
        %v558 = vpack.c.b16 %v553, %v552
        %v559 = vpack.c.b16 %v555, %v554
        %v562 = vunpack.c.l.b16 %v538
        %v563 = vunpack.c.l.b16 %v539
        %v564 = vpack.c.b16 %v563, %v562
        %vm566 = vcmask 130048
        %v568 = vsel %vm566, %v556, 0
        %v571 = vsel %vm566, %v557, 0
        %v574 = vsel %vm566, %v558, 0
        %v577 = vsel %vm566, %v559, 0
        %579 = vmatprep.subr.bf16.mxu0 0
        %580 = vmatpush1.bf16.msra.mxu0 0
        %581 = vmatprep.subr.bf16.mxu0 0
        %582 = vmatpush1.bf16.msra.mxu0 0
        %583 = vmatprep.subr.bf16.mxu0 0
        %584 = vmatpush1.bf16.msra.mxu0 0
        %585 = vmatprep.subr.bf16.mxu0 0
        %586 = vmatpush1.bf16.msra.mxu0 0
        %587 = vmatprep.subr.bf16.mxu0 0
        %588 = vmatpush1.bf16.msra.mxu0 0
        %589 = vmatprep.subr.bf16.mxu0 0
        %590 = vmatpush1.bf16.msra.mxu0 0
        %591 = vmatprep.subr.bf16.mxu0 0
        %592 = vmatpush1.bf16.msra.mxu0 0
        %593 = vmatprep.subr.bf16.mxu0 0
        %594 = vmatpush1.bf16.msra.mxu0 %v564
        %595 = vmatprep.subr.bf16.mxu0 0
        %596 = vmatpush2.bf16.msra.mxu0 0
        %597 = vmatprep.subr.bf16.mxu0 0
        %598 = vmatpush2.bf16.msra.mxu0 0
        %599 = vmatprep.subr.bf16.mxu0 0
        %600 = vmatpush2.bf16.msra.mxu0 0
        %601 = vmatprep.subr.bf16.mxu0 0
        %602 = vmatpush2.bf16.msra.mxu0 0
        %603 = vmatprep.subr.bf16.mxu0 0
        %604 = vmatpush2.bf16.msra.mxu0 0
        %605 = vmatprep.subr.bf16.mxu0 0
        %606 = vmatpush2.bf16.msra.mxu0 0
        %607 = vmatprep.subr.bf16.mxu0 0
        %608 = vmatpush2.bf16.msra.mxu0 0
        %609 = vmatprep.subr.bf16.mxu0 0
        %610 = vmatpush2.bf16.msra.mxu0 0
        %611 = vmatprep.mubr.bf16.mxu0 0
        %612 = vmatmul.mubr.bf16.gmra.mxu0 %v568
        %v613 = vpop.f32.mrf.mxu0
        %v614 = vadd.f32 0.0, %v613
        %v615 = vpop.f32.mrf.mxu0
        %v616 = vpop.f32.mrf.mxu0
        %v617 = vadd.f32 0.0, %v616
        %v618 = vpop.f32.mrf.mxu0
        %619 = vmatprep.mubr.bf16.mxu0 0
        %620 = vmatmul.mubr.bf16.gmra.mxu0 %v571
        %v621 = vpop.f32.mrf.mxu0
        %v622 = vadd.f32 0.0, %v621
        %v623 = vpop.f32.mrf.mxu0
        %v624 = vpop.f32.mrf.mxu0
        %v625 = vadd.f32 0.0, %v624
        %v626 = vpop.f32.mrf.mxu0
        %627 = vmatprep.mubr.bf16.mxu0 0
        %628 = vmatmul.mubr.bf16.gmra.mxu0 %v574
        %v629 = vpop.f32.mrf.mxu0
        %v630 = vadd.f32 0.0, %v629
        %v631 = vpop.f32.mrf.mxu0
        %v632 = vpop.f32.mrf.mxu0
        %v633 = vadd.f32 0.0, %v632
        %v634 = vpop.f32.mrf.mxu0
        %635 = vmatprep.mubr.bf16.mxu0 0
        %636 = vmatmul.mubr.bf16.gmra.mxu0 %v577
        %v637 = vpop.f32.mrf.mxu0
        %v638 = vadd.f32 0.0, %v637
        %v639 = vpop.f32.mrf.mxu0
        %v640 = vpop.f32.mrf.mxu0
        %v641 = vadd.f32 0.0, %v640
        %v642 = vpop.f32.mrf.mxu0
        %643 = vdwg.mxu0
        %v644 = vlaneseq
        %v645 = vshrl.u32 %v644, 7
        %v646 = vstv %s529
        %v647 = vadd.s32 %v646, %v645
        %v648 = vlaneseq
        %v649 = vand.u32 %v648, 127
        %vm650 = vcmp.eq.s32.totalorder %v647, %v649
        %v651 = vsel %vm650, 1, 0
        %v652 = vcvt.s32.f32 %v651
        %v653 = vlaneseq
        %v654 = vshrl.u32 %v653, 7
        %v655 = vsub.s32 0, %v654
        %v656 = vrot.slane %v652, %v655
        %658 = vbcast.lane.b32.xlu0 %v656, 256
        %v659 = vpop.permute.xlu0 %658
        %v660 = vlaneseq
        %v661 = vshrl.u32 %v660, 7
        %v662 = vsub.s32 1, %v661
        %v663 = vrot.slane %v652, %v662
        %665 = vbcast.lane.b32.xlu0 %v663, 256
        %v666 = vpop.permute.xlu0 %665
        %v667 = vlaneseq
        %v668 = vshrl.u32 %v667, 7
        %v669 = vsub.s32 2, %v668
        %v670 = vrot.slane %v652, %v669
        %672 = vbcast.lane.b32.xlu0 %v670, 256
        %v673 = vpop.permute.xlu0 %672
        %v674 = vlaneseq
        %v675 = vshrl.u32 %v674, 7
        %v676 = vsub.s32 3, %v675
        %v677 = vrot.slane %v652, %v676
        %679 = vbcast.lane.b32.xlu0 %v677, 256
        %v680 = vpop.permute.xlu0 %679
        %v681 = vlaneseq
        %v682 = vshrl.u32 %v681, 7
        %v683 = vsub.s32 4, %v682
        %v684 = vrot.slane %v652, %v683
        %686 = vbcast.lane.b32.xlu0 %v684, 256
        %v687 = vpop.permute.xlu0 %686
        %v688 = vlaneseq
        %v689 = vshrl.u32 %v688, 7
        %v690 = vsub.s32 5, %v689
        %v691 = vrot.slane %v652, %v690
        %693 = vbcast.lane.b32.xlu0 %v691, 256
        %v694 = vpop.permute.xlu0 %693
        %v695 = vlaneseq
        %v696 = vshrl.u32 %v695, 7
        %v697 = vsub.s32 6, %v696
        %v698 = vrot.slane %v652, %v697
        %700 = vbcast.lane.b32.xlu0 %v698, 256
        %v701 = vpop.permute.xlu0 %700
        %v702 = vlaneseq
        %v703 = vshrl.u32 %v702, 7
        %v704 = vsub.s32 7, %v703
        %v705 = vrot.slane %v652, %v704
        %707 = vbcast.lane.b32.xlu0 %v705, 256
        %v708 = vpop.permute.xlu0 %707
        %v709 = vld [vmem:[%s446] sm:$0xff]
        %v711 = vcombine.high %v709, %v709
        %v713 = vunpack.c.l.s4 1966171168
        %v714 = vunpack.c.0.s8 %v713
        %v715 = vlaneseq
        %v716 = vshrl.u32 %v715, 7
        %v717 = vsub.s32 %v714, %v716
        %v718 = vrot.slane %v709, %v717
        %v720 = vunpack.c.l.s4 1966171168
        %v721 = vunpack.c.0.s8 %v720
        %v722 = vlaneseq
        %v723 = vshrl.u32 %v722, 7
        %v724 = vsub.s32 %v721, %v723
        %v725 = vrot.slane %v711, %v724
        %v726 = vcombine.high %v718, %v718
        %v727 = vcombine.high %v725, %v725
        %v729 = vunpack.c.l.s4 1966171168
        %v730 = vunpack.c.0.s8 %v729
        %v731 = vlaneseq
        %v732 = vshrl.u32 %v731, 7
        %v733 = vsub.s32 %v730, %v732
        %v734 = vrot.slane %v718, %v733
        %v736 = vunpack.c.l.s4 1966171168
        %v737 = vunpack.c.0.s8 %v736
        %v738 = vlaneseq
        %v739 = vshrl.u32 %v738, 7
        %v740 = vsub.s32 %v737, %v739
        %v741 = vrot.slane %v725, %v740
        %v743 = vunpack.c.l.s4 1966171168
        %v744 = vunpack.c.0.s8 %v743
        %v745 = vlaneseq
        %v746 = vshrl.u32 %v745, 7
        %v747 = vsub.s32 %v744, %v746
        %v748 = vrot.slane %v726, %v747
        %v750 = vunpack.c.l.s4 1966171168
        %v751 = vunpack.c.0.s8 %v750
        %v752 = vlaneseq
        %v753 = vshrl.u32 %v752, 7
        %v754 = vsub.s32 %v751, %v753
        %v755 = vrot.slane %v727, %v754
        %v756 = vcombine.high %v734, %v734
        %v757 = vcombine.high %v741, %v741
        %v758 = vcombine.high %v748, %v748
        %v759 = vcombine.high %v755, %v755
        %v760 = vld [vmem:[%s455] sm:$0xff]
        %v762 = vcombine.high %v760, %v760
        %v764 = vunpack.c.l.s4 1966171168
        %v765 = vunpack.c.0.s8 %v764
        %v766 = vlaneseq
        %v767 = vshrl.u32 %v766, 7
        %v768 = vsub.s32 %v765, %v767
        %v769 = vrot.slane %v760, %v768
        %v771 = vunpack.c.l.s4 1966171168
        %v772 = vunpack.c.0.s8 %v771
        %v773 = vlaneseq
        %v774 = vshrl.u32 %v773, 7
        %v775 = vsub.s32 %v772, %v774
        %v776 = vrot.slane %v762, %v775
        %v777 = vcombine.high %v769, %v769
        %v778 = vcombine.high %v776, %v776
        %v780 = vunpack.c.l.s4 1966171168
        %v781 = vunpack.c.0.s8 %v780
        %v782 = vlaneseq
        %v783 = vshrl.u32 %v782, 7
        %v784 = vsub.s32 %v781, %v783
        %v785 = vrot.slane %v769, %v784
        %v787 = vunpack.c.l.s4 1966171168
        %v788 = vunpack.c.0.s8 %v787
        %v789 = vlaneseq
        %v790 = vshrl.u32 %v789, 7
        %v791 = vsub.s32 %v788, %v790
        %v792 = vrot.slane %v776, %v791
        %v794 = vunpack.c.l.s4 1966171168
        %v795 = vunpack.c.0.s8 %v794
        %v796 = vlaneseq
        %v797 = vshrl.u32 %v796, 7
        %v798 = vsub.s32 %v795, %v797
        %v799 = vrot.slane %v777, %v798
        %v801 = vunpack.c.l.s4 1966171168
        %v802 = vunpack.c.0.s8 %v801
        %v803 = vlaneseq
        %v804 = vshrl.u32 %v803, 7
        %v805 = vsub.s32 %v802, %v804
        %v806 = vrot.slane %v778, %v805
        %v807 = vcombine.high %v785, %v785
        %v808 = vcombine.high %v792, %v792
        %v809 = vcombine.high %v799, %v799
        %v810 = vcombine.high %v806, %v806
        %v811 = vlaneseq
        %v812 = vshrl.u32 %v811, 7
        %v813 = vsub.s32 0, %v812
        %v814 = vrot.slane %v785, %v813
        %v815 = vlaneseq
        %v816 = vshrl.u32 %v815, 7
        %v817 = vsub.s32 0, %v816
        %v818 = vrot.slane %v799, %v817
        %v819 = vlaneseq
        %v820 = vshrl.u32 %v819, 7
        %v821 = vsub.s32 0, %v820
        %v822 = vrot.slane %v807, %v821
        %v823 = vlaneseq
        %v824 = vshrl.u32 %v823, 7
        %v825 = vsub.s32 0, %v824
        %v826 = vrot.slane %v809, %v825
        %v827 = vlaneseq
        %v828 = vshrl.u32 %v827, 7
        %v829 = vsub.s32 0, %v828
        %v830 = vrot.slane %v792, %v829
        %v831 = vlaneseq
        %v832 = vshrl.u32 %v831, 7
        %v833 = vsub.s32 0, %v832
        %v834 = vrot.slane %v806, %v833
        %v835 = vlaneseq
        %v836 = vshrl.u32 %v835, 7
        %v837 = vsub.s32 0, %v836
        %v838 = vrot.slane %v808, %v837
        %v839 = vlaneseq
        %v840 = vshrl.u32 %v839, 7
        %v841 = vsub.s32 0, %v840
        %v842 = vrot.slane %v810, %v841
        %v851 = vmul.f32 %v659, %v814
        %v852 = vmul.f32 %v666, %v818
        %v853 = vmul.f32 %v673, %v822
        %v854 = vmul.f32 %v680, %v826
        %v855 = vmul.f32 %v687, %v830
        %v856 = vmul.f32 %v694, %v834
        %v857 = vmul.f32 %v701, %v838
        %v858 = vmul.f32 %v708, %v842
        %v859 = vlaneseq
        %v860 = vshrl.u32 %v859, 7
        %v861 = vsub.s32 0, %v860
        %v862 = vrot.slane %v734, %v861
        %v863 = vlaneseq
        %v864 = vshrl.u32 %v863, 7
        %v865 = vsub.s32 0, %v864
        %v866 = vrot.slane %v748, %v865
        %v867 = vlaneseq
        %v868 = vshrl.u32 %v867, 7
        %v869 = vsub.s32 0, %v868
        %v870 = vrot.slane %v756, %v869
        %v871 = vlaneseq
        %v872 = vshrl.u32 %v871, 7
        %v873 = vsub.s32 0, %v872
        %v874 = vrot.slane %v758, %v873
        %v875 = vlaneseq
        %v876 = vshrl.u32 %v875, 7
        %v877 = vsub.s32 0, %v876
        %v878 = vrot.slane %v741, %v877
        %v879 = vlaneseq
        %v880 = vshrl.u32 %v879, 7
        %v881 = vsub.s32 0, %v880
        %v882 = vrot.slane %v755, %v881
        %v883 = vlaneseq
        %v884 = vshrl.u32 %v883, 7
        %v885 = vsub.s32 0, %v884
        %v886 = vrot.slane %v757, %v885
        %v887 = vlaneseq
        %v888 = vshrl.u32 %v887, 7
        %v889 = vsub.s32 0, %v888
        %v890 = vrot.slane %v759, %v889
        %v899 = vadd.f32 %v862, %v851
        %v900 = vadd.f32 %v866, %v852
        %v901 = vadd.f32 %v870, %v853
        %v902 = vadd.f32 %v874, %v854
        %v903 = vadd.f32 %v878, %v855
        %v904 = vadd.f32 %v882, %v856
        %v905 = vadd.f32 %v886, %v857
        %v906 = vadd.f32 %v890, %v858
        %v907 = vld [vmem:[%s437] sm:$0xff]
        %v908 = vmul.f32 %v899, %v907
        %v909 = vmul.f32 %v900, %v907
        %v910 = vmul.f32 %v901, %v907
        %v911 = vmul.f32 %v902, %v907
        %v912 = vmul.f32 %v903, %v907
        %v913 = vmul.f32 %v904, %v907
        %v914 = vmul.f32 %v905, %v907
        %v915 = vmul.f32 %v906, %v907
        %v916 = vmul.f32 %v908, %v614
        %v917 = vmul.f32 %v909, %v617
        %v918 = vmul.f32 %v910, %v622
        %v919 = vmul.f32 %v911, %v625
        %v920 = vmul.f32 %v912, %v630
        %v921 = vmul.f32 %v913, %v633
        %v922 = vmul.f32 %v914, %v638
        %v923 = vmul.f32 %v915, %v641
        %v924 = vpack.c.bf16 %v917, %v916
        %v925 = vpack.c.bf16 %v919, %v918
        %v926 = vpack.c.bf16 %v921, %v920
        %v927 = vpack.c.bf16 %v923, %v922
        %v928 = vld [vmem:[#allocation11] sm:$0xf]
        %v929 = vld [vmem:[#allocation11 + $0x4] sm:$0xf]
        %v930 = vld [vmem:[#allocation11 + $0x8] sm:$0xf]
        %v931 = vld [vmem:[#allocation11 + $0xc] sm:$0xf]
        %v932 = vld [vmem:[#allocation11 + $0x10] sm:$0xf]
        %v933 = vld [vmem:[#allocation11 + $0x14] sm:$0xf]
        %v934 = vld [vmem:[#allocation11 + $0x18] sm:$0xf]
        %v935 = vld [vmem:[#allocation11 + $0x1c] sm:$0xf]
        %v936 = vld [vmem:[#allocation11 + $0x20] sm:$0xf]
        %v937 = vld [vmem:[#allocation11 + $0x24] sm:$0xf]
        %v938 = vld [vmem:[#allocation11 + $0x28] sm:$0xf]
        %v939 = vld [vmem:[#allocation11 + $0x2c] sm:$0xf]
        %v940 = vld [vmem:[#allocation11 + $0x30] sm:$0xf]
        %v941 = vld [vmem:[#allocation11 + $0x34] sm:$0xf]
        %v942 = vld [vmem:[#allocation11 + $0x38] sm:$0xf]
        %v943 = vld [vmem:[#allocation11 + $0x3c] sm:$0xf]
        %v944 = vld [vmem:[%s6] sm:$0x1]
        %v946 = vlaneseq
        %v947 = vshrl.u32 %v946, 7
        %v948 = vsub.s32 0, %v947
        %v949 = vrot.slane %v944, %v948
        %v967 = vunpack.c.l.b16 %v928
        %v968 = vunpack.c.l.b16 %v929
        %v969 = vunpack.c.l.b16 %v930
        %v970 = vunpack.c.l.b16 %v931
        %v971 = vunpack.c.l.b16 %v932
        %v972 = vunpack.c.l.b16 %v933
        %v973 = vunpack.c.l.b16 %v934
        %v974 = vunpack.c.l.b16 %v935
        %v975 = vunpack.c.l.b16 %v936
        %v976 = vunpack.c.l.b16 %v937
        %v977 = vunpack.c.l.b16 %v938
        %v978 = vunpack.c.l.b16 %v939
        %v979 = vunpack.c.l.b16 %v940
        %v980 = vunpack.c.l.b16 %v941
        %v981 = vunpack.c.l.b16 %v942
        %v982 = vunpack.c.l.b16 %v943
        %v983 = vpack.c.b16 %v968, %v967
        %v984 = vpack.c.b16 %v970, %v969
        %v985 = vpack.c.b16 %v972, %v971
        %v986 = vpack.c.b16 %v974, %v973
        %v987 = vpack.c.b16 %v976, %v975
        %v988 = vpack.c.b16 %v978, %v977
        %v989 = vpack.c.b16 %v980, %v979
        %v990 = vpack.c.b16 %v982, %v981
        %999 = vmatprep.subr.bf16.mxu0 0
        %1000 = vmatpush1.bf16.msra.mxu0 %v990
        %1001 = vmatprep.subr.bf16.mxu0 0
        %1002 = vmatpush1.bf16.msra.mxu0 %v989
        %1003 = vmatprep.subr.bf16.mxu0 0
        %1004 = vmatpush1.bf16.msra.mxu0 %v988
        %1005 = vmatprep.subr.bf16.mxu0 0
        %1006 = vmatpush1.bf16.msra.mxu0 %v987
        %1007 = vmatprep.subr.bf16.mxu0 0
        %1008 = vmatpush1.bf16.msra.mxu0 %v986
        %1009 = vmatprep.subr.bf16.mxu0 0
        %1010 = vmatpush1.bf16.msra.mxu0 %v985
        %1011 = vmatprep.subr.bf16.mxu0 0
        %1012 = vmatpush1.bf16.msra.mxu0 %v984
        %1013 = vmatprep.subr.bf16.mxu0 0
        %1014 = vmatpush1.bf16.msra.mxu0 %v983
        %1015 = vmatprep.subr.bf16.mxu0 0
        %1016 = vmatpush2.bf16.msra.mxu0 0
        %1017 = vmatprep.subr.bf16.mxu0 0
        %1018 = vmatpush2.bf16.msra.mxu0 0
        %1019 = vmatprep.subr.bf16.mxu0 0
        %1020 = vmatpush2.bf16.msra.mxu0 0
        %1021 = vmatprep.subr.bf16.mxu0 0
        %1022 = vmatpush2.bf16.msra.mxu0 0
        %1023 = vmatprep.subr.bf16.mxu0 0
        %1024 = vmatpush2.bf16.msra.mxu0 0
        %1025 = vmatprep.subr.bf16.mxu0 0
        %1026 = vmatpush2.bf16.msra.mxu0 0
        %1027 = vmatprep.subr.bf16.mxu0 0
        %1028 = vmatpush2.bf16.msra.mxu0 0
        %1029 = vmatprep.subr.bf16.mxu0 0
        %1030 = vmatpush2.bf16.msra.mxu0 0
        %1031 = vmatprep.mubr.bf16.mxu0 0
        %1032 = vmatmul.mubr.bf16.gmra.mxu0 %v924
        %v1033 = vpop.f32.mrf.mxu0
        %v1034 = vadd.f32 %v949, %v1033
        %v1035 = vpop.f32.mrf.mxu0
        %v1036 = vpop.f32.mrf.mxu0
        %v1037 = vadd.f32 %v949, %v1036
        %v1038 = vpop.f32.mrf.mxu0
        %1039 = vmatprep.mubr.bf16.mxu0 0
        %1040 = vmatmul.mubr.bf16.gmra.mxu0 %v925
        %v1041 = vpop.f32.mrf.mxu0
        %v1042 = vadd.f32 %v949, %v1041
        %v1043 = vpop.f32.mrf.mxu0
        %v1044 = vpop.f32.mrf.mxu0
        %v1045 = vadd.f32 %v949, %v1044
        %v1046 = vpop.f32.mrf.mxu0
        %1047 = vmatprep.mubr.bf16.mxu0 0
        %1048 = vmatmul.mubr.bf16.gmra.mxu0 %v926
        %v1049 = vpop.f32.mrf.mxu0
        %v1050 = vadd.f32 %v949, %v1049
        %v1051 = vpop.f32.mrf.mxu0
        %v1052 = vpop.f32.mrf.mxu0
        %v1053 = vadd.f32 %v949, %v1052
        %v1054 = vpop.f32.mrf.mxu0
        %1055 = vmatprep.mubr.bf16.mxu0 0
        %1056 = vmatmul.mubr.bf16.gmra.mxu0 %v927
        %v1057 = vpop.f32.mrf.mxu0
        %v1058 = vadd.f32 %v949, %v1057
        %v1059 = vpop.f32.mrf.mxu0
        %v1060 = vpop.f32.mrf.mxu0
        %v1061 = vadd.f32 %v949, %v1060
        %v1062 = vpop.f32.mrf.mxu0
        %1063 = vdwg.mxu0
        %v1064 = vxor.u32 %v1034, 2147483648
        %v1065 = vxor.u32 %v1037, 2147483648
        %v1066 = vxor.u32 %v1042, 2147483648
        %v1067 = vxor.u32 %v1045, 2147483648
        %v1068 = vxor.u32 %v1050, 2147483648
        %v1069 = vxor.u32 %v1053, 2147483648
        %v1070 = vxor.u32 %v1058, 2147483648
        %v1071 = vxor.u32 %v1061, 2147483648
        %v1072 = vmul.f32 %v1064, 1.442695
        %v1073 = vpow.pop %v1072
        %v1074 = vmul.f32 %v1065, 1.442695
        %v1075 = vpow.pop %v1074
        %v1076 = vmul.f32 %v1066, 1.442695
        %v1077 = vpow.pop %v1076
        %v1078 = vmul.f32 %v1067, 1.442695
        %v1079 = vpow.pop %v1078
        %v1080 = vmul.f32 %v1068, 1.442695
        %v1081 = vpow.pop %v1080
        %v1082 = vmul.f32 %v1069, 1.442695
        %v1083 = vpow.pop %v1082
        %v1084 = vmul.f32 %v1070, 1.442695
        %v1085 = vpow.pop %v1084
        %v1086 = vmul.f32 %v1071, 1.442695
        %v1087 = vpow.pop %v1086
        %v1088 = vadd.f32 %v1073, 1.0
        %v1089 = vadd.f32 %v1075, 1.0
        %v1090 = vadd.f32 %v1077, 1.0
        %v1091 = vadd.f32 %v1079, 1.0
        %v1092 = vadd.f32 %v1081, 1.0
        %v1093 = vadd.f32 %v1083, 1.0
        %v1094 = vadd.f32 %v1085, 1.0
        %v1095 = vadd.f32 %v1087, 1.0
        %v1096 = vrcp.pop %v1088
        %v1097 = vmul.f32 1.0, %v1096
        %v1098 = vrcp.pop %v1089
        %v1099 = vmul.f32 1.0, %v1098
        %v1100 = vrcp.pop %v1090
        %v1101 = vmul.f32 1.0, %v1100
        %v1102 = vrcp.pop %v1091
        %v1103 = vmul.f32 1.0, %v1102
        %v1104 = vrcp.pop %v1092
        %v1105 = vmul.f32 1.0, %v1104
        %v1106 = vrcp.pop %v1093
        %v1107 = vmul.f32 1.0, %v1106
        %v1108 = vrcp.pop %v1094
        %v1109 = vmul.f32 1.0, %v1108
        %v1110 = vrcp.pop %v1095
        %v1111 = vmul.f32 1.0, %v1110
        %v1112 = vmul.f32 %v1034, %v1097
        %v1113 = vmul.f32 %v1037, %v1099
        %v1114 = vmul.f32 %v1042, %v1101
        %v1115 = vmul.f32 %v1045, %v1103
        %v1116 = vmul.f32 %v1050, %v1105
        %v1117 = vmul.f32 %v1053, %v1107
        %v1118 = vmul.f32 %v1058, %v1109
        %v1119 = vmul.f32 %v1061, %v1111
        %v1120 = vpack.c.bf16 %v1113, %v1112
        %v1121 = vpack.c.bf16 %v1115, %v1114
        %v1122 = vpack.c.bf16 %v1117, %v1116
        %v1123 = vpack.c.bf16 %v1119, %v1118
        %v1124 = vld [vmem:[#allocation13] sm:$0xf]
        %v1125 = vld [vmem:[#allocation13 + $0x4] sm:$0xf]
        %v1126 = vld [vmem:[#allocation13 + $0x8] sm:$0xf]
        %v1127 = vld [vmem:[#allocation13 + $0xc] sm:$0xf]
        %v1128 = vld [vmem:[#allocation13 + $0x10] sm:$0xf]
        %v1129 = vld [vmem:[#allocation13 + $0x14] sm:$0xf]
        %v1130 = vld [vmem:[#allocation13 + $0x18] sm:$0xf]
        %v1131 = vld [vmem:[#allocation13 + $0x1c] sm:$0xf]
        %v1132 = vld [vmem:[#allocation13 + $0x20] sm:$0xf]
        %v1133 = vld [vmem:[#allocation13 + $0x24] sm:$0xf]
        %v1134 = vld [vmem:[#allocation13 + $0x28] sm:$0xf]
        %v1135 = vld [vmem:[#allocation13 + $0x2c] sm:$0xf]
        %v1136 = vld [vmem:[#allocation13 + $0x30] sm:$0xf]
        %v1137 = vld [vmem:[#allocation13 + $0x34] sm:$0xf]
        %v1138 = vld [vmem:[#allocation13 + $0x38] sm:$0xf]
        %v1139 = vld [vmem:[#allocation13 + $0x3c] sm:$0xf]
        %v1140 = vld [vmem:[%s8] sm:$0x1]
        %v1142 = vlaneseq
        %v1143 = vshrl.u32 %v1142, 7
        %v1144 = vsub.s32 0, %v1143
        %v1145 = vrot.slane %v1140, %v1144
        %v1163 = vunpack.c.l.b16 %v1124
        %v1164 = vunpack.c.l.b16 %v1125
        %v1165 = vunpack.c.l.b16 %v1126
        %v1166 = vunpack.c.l.b16 %v1127
        %v1167 = vunpack.c.l.b16 %v1128
        %v1168 = vunpack.c.l.b16 %v1129
        %v1169 = vunpack.c.l.b16 %v1130
        %v1170 = vunpack.c.l.b16 %v1131
        %v1171 = vunpack.c.l.b16 %v1132
        %v1172 = vunpack.c.l.b16 %v1133
        %v1173 = vunpack.c.l.b16 %v1134
        %v1174 = vunpack.c.l.b16 %v1135
        %v1175 = vunpack.c.l.b16 %v1136
        %v1176 = vunpack.c.l.b16 %v1137
        %v1177 = vunpack.c.l.b16 %v1138
        %v1178 = vunpack.c.l.b16 %v1139
        %v1179 = vpack.c.b16 %v1164, %v1163
        %v1180 = vpack.c.b16 %v1166, %v1165
        %v1181 = vpack.c.b16 %v1168, %v1167
        %v1182 = vpack.c.b16 %v1170, %v1169
        %v1183 = vpack.c.b16 %v1172, %v1171
        %v1184 = vpack.c.b16 %v1174, %v1173
        %v1185 = vpack.c.b16 %v1176, %v1175
        %v1186 = vpack.c.b16 %v1178, %v1177
        %1195 = vmatprep.subr.bf16.mxu0 0
        %1196 = vmatpush1.bf16.msra.mxu0 %v1186
        %1197 = vmatprep.subr.bf16.mxu0 0
        %1198 = vmatpush1.bf16.msra.mxu0 %v1185
        %1199 = vmatprep.subr.bf16.mxu0 0
        %1200 = vmatpush1.bf16.msra.mxu0 %v1184
        %1201 = vmatprep.subr.bf16.mxu0 0
        %1202 = vmatpush1.bf16.msra.mxu0 %v1183
        %1203 = vmatprep.subr.bf16.mxu0 0
        %1204 = vmatpush1.bf16.msra.mxu0 %v1182
        %1205 = vmatprep.subr.bf16.mxu0 0
        %1206 = vmatpush1.bf16.msra.mxu0 %v1181
        %1207 = vmatprep.subr.bf16.mxu0 0
        %1208 = vmatpush1.bf16.msra.mxu0 %v1180
        %1209 = vmatprep.subr.bf16.mxu0 0
        %1210 = vmatpush1.bf16.msra.mxu0 %v1179
        %1211 = vmatprep.subr.bf16.mxu0 0
        %1212 = vmatpush2.bf16.msra.mxu0 0
        %1213 = vmatprep.subr.bf16.mxu0 0
        %1214 = vmatpush2.bf16.msra.mxu0 0
        %1215 = vmatprep.subr.bf16.mxu0 0
        %1216 = vmatpush2.bf16.msra.mxu0 0
        %1217 = vmatprep.subr.bf16.mxu0 0
        %1218 = vmatpush2.bf16.msra.mxu0 0
        %1219 = vmatprep.subr.bf16.mxu0 0
        %1220 = vmatpush2.bf16.msra.mxu0 0
        %1221 = vmatprep.subr.bf16.mxu0 0
        %1222 = vmatpush2.bf16.msra.mxu0 0
        %1223 = vmatprep.subr.bf16.mxu0 0
        %1224 = vmatpush2.bf16.msra.mxu0 0
        %1225 = vmatprep.subr.bf16.mxu0 0
        %1226 = vmatpush2.bf16.msra.mxu0 0
        %1227 = vmatprep.mubr.bf16.mxu0 0
        %1228 = vmatmul.mubr.bf16.gmra.mxu0 %v1120
        %v1229 = vpop.f32.mrf.mxu0
        %v1230 = vadd.f32 %v1145, %v1229
        %v1231 = vpop.f32.mrf.mxu0
        %v1232 = vpop.f32.mrf.mxu0
        %v1233 = vadd.f32 %v1145, %v1232
        %v1234 = vpop.f32.mrf.mxu0
        %1235 = vmatprep.mubr.bf16.mxu0 0
        %1236 = vmatmul.mubr.bf16.gmra.mxu0 %v1121
        %v1237 = vpop.f32.mrf.mxu0
        %v1238 = vadd.f32 %v1145, %v1237
        %v1239 = vpop.f32.mrf.mxu0
        %v1240 = vpop.f32.mrf.mxu0
        %v1241 = vadd.f32 %v1145, %v1240
        %v1242 = vpop.f32.mrf.mxu0
        %1243 = vmatprep.mubr.bf16.mxu0 0
        %1244 = vmatmul.mubr.bf16.gmra.mxu0 %v1122
        %v1245 = vpop.f32.mrf.mxu0
        %v1246 = vadd.f32 %v1145, %v1245
        %v1247 = vpop.f32.mrf.mxu0
        %v1248 = vpop.f32.mrf.mxu0
        %v1249 = vadd.f32 %v1145, %v1248
        %v1250 = vpop.f32.mrf.mxu0
        %1251 = vmatprep.mubr.bf16.mxu0 0
        %1252 = vmatmul.mubr.bf16.gmra.mxu0 %v1123
        %v1253 = vpop.f32.mrf.mxu0
        %v1254 = vadd.f32 %v1145, %v1253
        %v1255 = vpop.f32.mrf.mxu0
        %v1256 = vpop.f32.mrf.mxu0
        %v1257 = vadd.f32 %v1145, %v1256
        %v1258 = vpop.f32.mrf.mxu0
        %1259 = vdwg.mxu0
        %v1260 = vxor.u32 %v1230, 2147483648
        %v1261 = vxor.u32 %v1233, 2147483648
        %v1262 = vxor.u32 %v1238, 2147483648
        %v1263 = vxor.u32 %v1241, 2147483648
        %v1264 = vxor.u32 %v1246, 2147483648
        %v1265 = vxor.u32 %v1249, 2147483648
        %v1266 = vxor.u32 %v1254, 2147483648
        %v1267 = vxor.u32 %v1257, 2147483648
        %v1268 = vmul.f32 %v1260, 1.442695
        %v1269 = vpow.pop %v1268
        %v1270 = vmul.f32 %v1261, 1.442695
        %v1271 = vpow.pop %v1270
        %v1272 = vmul.f32 %v1262, 1.442695
        %v1273 = vpow.pop %v1272
        %v1274 = vmul.f32 %v1263, 1.442695
        %v1275 = vpow.pop %v1274
        %v1276 = vmul.f32 %v1264, 1.442695
        %v1277 = vpow.pop %v1276
        %v1278 = vmul.f32 %v1265, 1.442695
        %v1279 = vpow.pop %v1278
        %v1280 = vmul.f32 %v1266, 1.442695
        %v1281 = vpow.pop %v1280
        %v1282 = vmul.f32 %v1267, 1.442695
        %v1283 = vpow.pop %v1282
        %v1284 = vadd.f32 %v1269, 1.0
        %v1285 = vadd.f32 %v1271, 1.0
        %v1286 = vadd.f32 %v1273, 1.0
        %v1287 = vadd.f32 %v1275, 1.0
        %v1288 = vadd.f32 %v1277, 1.0
        %v1289 = vadd.f32 %v1279, 1.0
        %v1290 = vadd.f32 %v1281, 1.0
        %v1291 = vadd.f32 %v1283, 1.0
        %v1292 = vrcp.pop %v1284
        %v1293 = vmul.f32 1.0, %v1292
        %v1294 = vrcp.pop %v1285
        %v1295 = vmul.f32 1.0, %v1294
        %v1296 = vrcp.pop %v1286
        %v1297 = vmul.f32 1.0, %v1296
        %v1298 = vrcp.pop %v1287
        %v1299 = vmul.f32 1.0, %v1298
        %v1300 = vrcp.pop %v1288
        %v1301 = vmul.f32 1.0, %v1300
        %v1302 = vrcp.pop %v1289
        %v1303 = vmul.f32 1.0, %v1302
        %v1304 = vrcp.pop %v1290
        %v1305 = vmul.f32 1.0, %v1304
        %v1306 = vrcp.pop %v1291
        %v1307 = vmul.f32 1.0, %v1306
        %v1308 = vmul.f32 %v1230, %v1293
        %v1309 = vmul.f32 %v1233, %v1295
        %v1310 = vmul.f32 %v1238, %v1297
        %v1311 = vmul.f32 %v1241, %v1299
        %v1312 = vmul.f32 %v1246, %v1301
        %v1313 = vmul.f32 %v1249, %v1303
        %v1314 = vmul.f32 %v1254, %v1305
        %v1315 = vmul.f32 %v1257, %v1307
        %v1316 = vadd.f32 %v1308, %v916
        %v1317 = vadd.f32 %v1309, %v917
        %v1318 = vadd.f32 %v1310, %v918
        %v1319 = vadd.f32 %v1311, %v919
        %v1320 = vadd.f32 %v1312, %v920
        %v1321 = vadd.f32 %v1313, %v921
        %v1322 = vadd.f32 %v1314, %v922
        %v1323 = vadd.f32 %v1315, %v923
        %1324 = vst [vmem:[%s525] sm:$0xff] %v1316
        %1325 = vst [vmem:[%s525 + $0x8] sm:$0xff] %v1317
        %1326 = vst [vmem:[%s525 + $0x10] sm:$0xff] %v1318
        %1327 = vst [vmem:[%s525 + $0x18] sm:$0xff] %v1319
        %1328 = vst [vmem:[%s525 + $0x20] sm:$0xff] %v1320
        %1329 = vst [vmem:[%s525 + $0x28] sm:$0xff] %v1321
        %1330 = vst [vmem:[%s525 + $0x30] sm:$0xff] %v1322
        %1331 = vst [vmem:[%s525 + $0x38] sm:$0xff] %v1323
        %s1332 = sand.u32 %s270, 1
        %s1333 = scalar_lea.sflag [#allocation4], %s1332
        %s1334 = sand.u32 %s270, 1
        %s1335 = smul.addr %s1334, 64
        %s1336 = scalar_lea.vmem [#allocation14], %s1335
        // Predicated region
        $region85: #{tpu_custom_call.1} parent=55 // pred_check
          %p1337 = pneg %p280
        $region86: #{tpu_custom_call.1} parent=55 // pred_check_branch
          %1339 = sbr.rel (%p1337) target = $region88
        $region87: #{tpu_custom_call.1} parent=55 // pred_region
          %s1340 = smul.u32 8, %s38
          %s1342 = ssub.s32 1024, 1024
          %1343 = vsyncadd %s1333, %s1342
          %s1344 = smul.addr %s37, 8
          %s1345 = sadd.s32 %s1340, %s1344
          %s1346 = smul.addr %s1345, 128
          %s1347 = scalar_lea.hbm %s9, %s1346
          %s1348 = sshll.u32 %s1336, 4
          %s1349 = int_to_ptr.vmem [resolvable:$true] %s1348
          %1354 = dma.vmem_to_hbm [thread:$0]  %s1349, 1024, %s1347, %s1333, 128, 128, 8
        $region88: #{tpu_custom_call.1} parent=55 // pred_fallthru
          _
      $region56: #{tpu_custom_call.1} parent=5 // pred_fallthru
        _
      %p1355 = scmp.le.s32.totalorder 2, %s28
      // Predicated region
      $region89: #{tpu_custom_call.1} parent=5 // pred_check
        %p1356 = pneg %p1355
      $region90: #{tpu_custom_call.1} parent=5 // pred_check_branch
        %1358 = sbr.rel (%p1356) target = $region92
      $region91: #{tpu_custom_call.1} parent=5 // pred_region
        %s1359 = ssub.s32 %s28, 2
        // Predicated region
        $region93: #{tpu_custom_call.1} parent=91 // pred_check
          %p1360 = pneg %p286
        $region94: #{tpu_custom_call.1} parent=91 // pred_check_branch
          %1362 = sbr.rel (%p1360) target = $region96
        $region95: #{tpu_custom_call.1} parent=91 // pred_region
          %s1363 = sand.u32 %s271, 1
          %s1364 = scalar_lea.sflag [#allocation4], %s1363
          %s1365 = sand.u32 %s271, 1
          %s1366 = smul.addr %s1365, 64
          %s1367 = scalar_lea.vmem [#allocation14], %s1366
          %1368 = dma.done %s1364, 1024
        $region96: #{tpu_custom_call.1} parent=91 // pred_fallthru
          _
      $region92: #{tpu_custom_call.1} parent=5 // pred_fallthru
        _
    $region6: #{tpu_custom_call.1} parent=1 // loop_footer
      %s32 = sadd.s32 1, %s28
    $region7: #{tpu_custom_call.1} parent=1 // loop_footer_branch
      %27 = sbr.rel target = $region3
    $region8: #{tpu_custom_call.1} parent=1 // loop_exit
      _
    %1369 = vsyncpa [#allocation3], 1
    %s1370 = scalar_lea.sflag [#allocation3], 1
    %1371 = vsyncpa %s1370, 1
    %1372 = vsyncpa [#allocation6], 1
    %s1373 = scalar_lea.sflag [#allocation6], 1
    %1374 = vsyncpa %s1373, 1
    %1375 = vsyncpa [#allocation9], 1
    %s1376 = scalar_lea.sflag [#allocation9], 1
    %1377 = vsyncpa %s1376, 1
    %1378 = vsyncpa [#allocation12], 1
    %1379 = vsyncpa [#allocation4], 1
    %s1380 = scalar_lea.sflag [#allocation4], 1
    %1381 = vsyncpa %s1380, 1

</llo_original>
